<compile_context>
chip_gen: v5e
topology: v5e:2x2
jax: 0.10.0
libtpu: 0.0.40
codegen_flags: <defaults>
</compile_context>

<pallas_src>
import jax
import jax.numpy as jnp
from jax import lax
from jax.experimental import pallas as pl
from jax.experimental.pallas import tpu as pltpu


# ----------------------------- config ---------------------------------------
VOCAB_SIZE = 26
N_EMBD = 64          # embedding dim (small, consistent with the module)
D_MODEL = 32         # LSTM hidden size
N_LAYERS = 2
PADDING_IDX = 25     # spec default padding_idx=26 is out of range for vocab 26

BATCH = 2
SEQ = 8

H = D_MODEL
G = 4 * D_MODEL      # 128 == exactly one 128-lane vreg row


# ----------------------------- fused Pallas kernel ---------------------------
def fused_lstm_fc_kernel(x_ref, wih0_ref, whh0_ref, b0_ref,
                         wih1_ref, whh1_ref, b1_ref,
                         fcw_ref, fcb_ref,
                         out_ref,
                         h0_all, h1_all):
    """Whole post-embedding forward in one kernel (single invocation, no grid).

    x_ref:    (T*B, E)  time-major flattened embeddings
    wih0_ref: (E, 4H)   layer-0 input->gate weights (torch W_ih^T)
    whh0_ref: (4H, 4H)  layer-0 hidden->gate weights, rows [H,4H) zero-padded
    b0_ref:   (1, 4H)   b_ih0 + b_hh0
    wih1_ref: (4H, 4H)  layer-1 input->gate weights, rows [H,4H) zero-padded
    whh1_ref: (4H, 4H)  layer-1 hidden->gate weights, rows [H,4H) zero-padded
    b1_ref:   (1, 4H)   b_ih1 + b_hh1
    fcw_ref:  (4H, V)   fc weight (torch fc_w^T), rows [H,4H) zero-padded
    fcb_ref:  (1, V)
    out_ref:  (T*B, V)  time-major flattened logits
    h0_all/h1_all: (T*B, 4H) VMEM scratch for the per-layer hidden sequences.

    Gate order along lanes matches PyTorch: [i | f | g | o], each H=32 lanes.
    """
    B, T = BATCH, SEQ

    def run_layer(pre_all, whh_pad, h_all_ref):
        # h/c are kept 128 lanes wide: lanes [0,H) are the real state, lanes
        # [H,4H) are bounded junk (products of sigmoids/tanh) that never leaks
        # because the corresponding weight rows are zero.
        h = jnp.zeros((B, G), jnp.float32)
        c = jnp.zeros((B, G), jnp.float32)
        for t in range(T):                           # static unroll (T = 8)
            pre = pre_all[t * B:(t + 1) * B, :]      # (B, 4H) sublane slice
            gates = pre + jnp.dot(h, whh_pad,
                                  preferred_element_type=jnp.float32)
            s = jax.nn.sigmoid(gates)                # [ i | f | . | o ]  (EUP)
            tg = jnp.tanh(gates)                     # [ . | . | g | . ]  (EUP)
            g_al = pltpu.roll(tg, 2 * H, axis=1)     # g -> lanes [0,H)   (XLU)
            f_al = pltpu.roll(s, 3 * H, axis=1)      # f -> lanes [0,H)
            o_al = pltpu.roll(s, H, axis=1)          # o -> lanes [0,H)
            c = f_al * c + s * g_al                  # lanes [0,H): f*c + i*g
            h = o_al * jnp.tanh(c)                   # lanes [0,H): o*tanh(c)
            h_all_ref[t * B:(t + 1) * B, :] = h      # VMEM scratch, not HBM
        return h_all_ref[...]

    # ---- layer 0: hoisted input projection (one MXU tile), then recurrence
    pre0 = (jnp.dot(x_ref[...], wih0_ref[...],
                    preferred_element_type=jnp.float32) + b0_ref[...])
    h0 = run_layer(pre0, whh0_ref[...], h0_all)      # (T*B, 4H)

    # ---- layer 1: hoisted input projection over the whole sequence
    pre1 = (jnp.dot(h0, wih1_ref[...],
                    preferred_element_type=jnp.float32) + b1_ref[...])
    h1 = run_layer(pre1, whh1_ref[...], h1_all)      # (T*B, 4H)

    # ---- final fc: single matmul + single writeback of all logits
    out_ref[...] = (jnp.dot(h1, fcw_ref[...],
                            preferred_element_type=jnp.float32) + fcb_ref[...])


def _fused_forward(x_flat, kp):
    """x_flat: (T*B, E) f32 time-major -> (T*B, V) f32 logits."""
    return pl.pallas_call(
        fused_lstm_fc_kernel,
        out_shape=jax.ShapeDtypeStruct((SEQ * BATCH, VOCAB_SIZE), jnp.float32),
        scratch_shapes=[
            pltpu.VMEM((SEQ * BATCH, G), jnp.float32),   # layer-0 h sequence
            pltpu.VMEM((SEQ * BATCH, G), jnp.float32),   # layer-1 h sequence
        ],
    )(x_flat, kp["wih0"], kp["whh0"], kp["b0"],
      kp["wih1"], kp["whh1"], kp["b1"], kp["fcw"], kp["fcb"])


@jax.jit
def recurrent_model_forward(input_ids, kparams):
    """Equivalent of RecurrentModel.forward(input_ids) (no labels) -> logits."""
    # Embedding lookup is glue (gather) in plain JAX; emit time-major flat so
    # the kernel needs no in-kernel reshape of the input slab.
    ids_tb = input_ids.T.reshape(-1)                        # (T*B,)
    x = jnp.take(kparams["embedding"], ids_tb, axis=0)      # (T*B, E)
    logits_flat = _fused_forward(x, kparams)                # (T*B, V)
    return logits_flat.reshape(SEQ, BATCH, VOCAB_SIZE).transpose(1, 0, 2)


# ----------------------------- kernel-layout params --------------------------
def prepare_kernel_params(params):
    """One-time transposes / zero-padding / bias fusion (NOT per forward)."""
    def pad_rows(w, rows):
        out = jnp.zeros((rows, w.shape[1]), jnp.float32)
        return out.at[:w.shape[0]].set(w.astype(jnp.float32))

    kp = {"embedding": params["embedding"].astype(jnp.float32)}
    kp["wih0"] = params["w_ih_l0"].T.astype(jnp.float32)          # (E, 4H)
    kp["whh0"] = pad_rows(params["w_hh_l0"].T, G)                 # (4H, 4H)
    kp["b0"] = (params["b_ih_l0"] + params["b_hh_l0"]).reshape(1, G).astype(jnp.float32)
    kp["wih1"] = pad_rows(params["w_ih_l1"].T, G)                 # (4H, 4H)
    kp["whh1"] = pad_rows(params["w_hh_l1"].T, G)                 # (4H, 4H)
    kp["b1"] = (params["b_ih_l1"] + params["b_hh_l1"]).reshape(1, G).astype(jnp.float32)
    kp["fcw"] = pad_rows(params["fc_w"].T, G)                     # (4H, V)
    kp["fcb"] = params["fc_b"].reshape(1, VOCAB_SIZE).astype(jnp.float32)
    return kp


# ----------------------------- reference (pure JAX) ---------------------------
def lstm_layer_ref(x_bte, w_ih, w_hh, b_ih, b_hh):
    B, T, E = x_bte.shape
    Hh = w_hh.shape[1]

    def step(carry, x_t):
        h, c = carry
        gates = x_t @ w_ih.T + h @ w_hh.T + b_ih + b_hh
        i_g = jax.nn.sigmoid(gates[:, 0 * Hh:1 * Hh])
        f_g = jax.nn.sigmoid(gates[:, 1 * Hh:2 * Hh])
        g_g = jnp.tanh(gates[:, 2 * Hh:3 * Hh])
        o_g = jax.nn.sigmoid(gates[:, 3 * Hh:4 * Hh])
        c_new = f_g * c + i_g * g_g
        h_new = o_g * jnp.tanh(c_new)
        return (h_new, c_new), h_new

    h0 = jnp.zeros((B, Hh), jnp.float32)
    c0 = jnp.zeros((B, Hh), jnp.float32)
    _, hs = lax.scan(step, (h0, c0), jnp.transpose(x_bte, (1, 0, 2)))
    return jnp.transpose(hs, (1, 0, 2))


def reference_forward(input_ids, params):
    x = jnp.take(params["embedding"], input_ids, axis=0)
    h = x
    for layer in range(N_LAYERS):
        h = lstm_layer_ref(
            h,
            params[f"w_ih_l{layer}"],
            params[f"w_hh_l{layer}"],
            params[f"b_ih_l{layer}"],
            params[f"b_hh_l{layer}"],
        )
    return h @ params["fc_w"].T + params["fc_b"]


# ----------------------------- param init ------------------------------------
def init_params(key):
    params = {}
    keys = jax.random.split(key, 4 + 4 * N_LAYERS)
    ki = iter(keys)

    emb = jax.random.normal(next(ki), (VOCAB_SIZE, N_EMBD), jnp.float32)
    emb = emb.at[PADDING_IDX].set(0.0)                     # padding_idx row zeroed
    params["embedding"] = emb

    k_lstm = 1.0 / jnp.sqrt(jnp.float32(D_MODEL))
    for layer in range(N_LAYERS):
        in_dim = N_EMBD if layer == 0 else D_MODEL
        params[f"w_ih_l{layer}"] = jax.random.uniform(
            next(ki), (4 * D_MODEL, in_dim), jnp.float32, -k_lstm, k_lstm)
        params[f"w_hh_l{layer}"] = jax.random.uniform(
            next(ki), (4 * D_MODEL, D_MODEL), jnp.float32, -k_lstm, k_lstm)
        params[f"b_ih_l{layer}"] = jax.random.uniform(
            next(ki), (4 * D_MODEL,), jnp.float32, -k_lstm, k_lstm)
        params[f"b_hh_l{layer}"] = jax.random.uniform(
            next(ki), (4 * D_MODEL,), jnp.float32, -k_lstm, k_lstm)

    k_fc = 1.0 / jnp.sqrt(jnp.float32(D_MODEL))
    params["fc_w"] = jax.random.uniform(
        next(ki), (VOCAB_SIZE, D_MODEL), jnp.float32, -k_fc, k_fc)
    params["fc_b"] = jax.random.uniform(
        next(ki), (VOCAB_SIZE,), jnp.float32, -k_fc, k_fc)
    return params


# ----------------------------- main -------------------------------------------
if __name__ == "__main__":
    key = jax.random.PRNGKey(0)
    pkey, dkey = jax.random.split(key)
    params = init_params(pkey)
    kparams = prepare_kernel_params(params)     # one-time layout conversion

    input_ids = jax.random.randint(dkey, (BATCH, SEQ), 0, VOCAB_SIZE, jnp.int32)

    logits = recurrent_model_forward(input_ids, kparams)
    logits = jax.block_until_ready(logits)

    ref = reference_forward(input_ids, params)
    assert logits.shape == (BATCH, SEQ, VOCAB_SIZE), logits.shape
    max_err = float(jnp.max(jnp.abs(logits - ref)))
    assert jnp.allclose(logits, ref, atol=1e-4, rtol=1e-4), max_err

    # TODO(synk): the labels branch (shifted CrossEntropyLoss) and the sampling
    # `generate` loop are host-side control flow / np.random, not implemented
    # as kernels.
    print("KERNEL_OK")
</pallas_src>

<mosaic_0001>
module attributes {stable_mosaic.version = 11 : i64} {
  func.func @fused_lstm_fc_kernel(%arg0: memref<16x64xf32, #tpu.memory_space<vmem>>, %arg1: memref<64x128xf32, #tpu.memory_space<vmem>>, %arg2: memref<128x128xf32, #tpu.memory_space<vmem>>, %arg3: memref<1x128xf32, #tpu.memory_space<vmem>>, %arg4: memref<128x128xf32, #tpu.memory_space<vmem>>, %arg5: memref<128x128xf32, #tpu.memory_space<vmem>>, %arg6: memref<1x128xf32, #tpu.memory_space<vmem>>, %arg7: memref<128x26xf32, #tpu.memory_space<vmem>>, %arg8: memref<1x26xf32, #tpu.memory_space<vmem>>, %arg9: memref<16x26xf32, #tpu.memory_space<vmem>>, %arg10: memref<16x128xf32, #tpu.memory_space<vmem>>, %arg11: memref<16x128xf32, #tpu.memory_space<vmem>>) attributes {dimension_semantics = [], scalar_prefetch = 0 : i64, scratch_operands = 2 : i64, tpu.core_type = #tpu.core_type<tc>} {
    %c0 = arith.constant 0 : index
    %c0_0 = arith.constant 0 : index
    %0 = vector.load %arg0[%c0, %c0_0] : memref<16x64xf32, #tpu.memory_space<vmem>>, vector<16x64xf32>
    %c0_1 = arith.constant 0 : index
    %c0_2 = arith.constant 0 : index
    %1 = vector.load %arg1[%c0_1, %c0_2] : memref<64x128xf32, #tpu.memory_space<vmem>>, vector<64x128xf32>
    %cst = arith.constant dense<0.000000e+00> : vector<16x128xf32>
    %2 = tpu.matmul %0, %1, %cst {dimension_numbers = #tpu.dot_dimension_numbers<[1], [0], [0], [1], [0, 0, 1, 1], [], []>} : vector<16x64xf32>, vector<64x128xf32>, vector<16x128xf32> -> vector<16x128xf32>
    %c0_3 = arith.constant 0 : index
    %c0_4 = arith.constant 0 : index
    %3 = vector.load %arg3[%c0_3, %c0_4] : memref<1x128xf32, #tpu.memory_space<vmem>>, vector<1x128xf32>
    %4 = vector.broadcast %3 : vector<1x128xf32> to vector<16x128xf32>
    %5 = arith.addf %2, %4 : vector<16x128xf32>
    %c0_5 = arith.constant 0 : index
    %c0_6 = arith.constant 0 : index
    %6 = vector.load %arg2[%c0_5, %c0_6] : memref<128x128xf32, #tpu.memory_space<vmem>>, vector<128x128xf32>
    %cst_7 = arith.constant 0.000000e+00 : f32
    %7 = vector.broadcast %cst_7 : f32 to vector<2x128xf32>
    %cst_8 = arith.constant 0.000000e+00 : f32
    %8 = vector.broadcast %cst_8 : f32 to vector<2x128xf32>
    %9 = vector.extract_strided_slice %5 {offsets = [0, 0], sizes = [2, 128], strides = [1, 1]} : vector<16x128xf32> to vector<2x128xf32>
    %cst_9 = arith.constant dense<0.000000e+00> : vector<2x128xf32>
    %10 = tpu.matmul %7, %6, %cst_9 {dimension_numbers = #tpu.dot_dimension_numbers<[1], [0], [0], [1], [0, 0, 1, 1], [], []>} : vector<2x128xf32>, vector<128x128xf32>, vector<2x128xf32> -> vector<2x128xf32>
    %11 = arith.addf %9, %10 : vector<2x128xf32>
    %12 = arith.negf %11 : vector<2x128xf32>
    %13 = math.exp %12 : vector<2x128xf32>
    %cst_10 = arith.constant 1.000000e+00 : f32
    %14 = vector.broadcast %cst_10 : f32 to vector<2x128xf32>
    %15 = arith.addf %14, %13 : vector<2x128xf32>
    %16 = arith.divf %14, %15 : vector<2x128xf32>
    %17 = math.tanh %11 : vector<2x128xf32>
    %c64_i32 = arith.constant 64 : i32
    %18 = tpu.dynamic_rotate %17 by %c64_i32 dim 1 : vector<2x128xf32>, i32 -> vector<2x128xf32>
    %c96_i32 = arith.constant 96 : i32
    %19 = tpu.dynamic_rotate %16 by %c96_i32 dim 1 : vector<2x128xf32>, i32 -> vector<2x128xf32>
    %c32_i32 = arith.constant 32 : i32
    %20 = tpu.dynamic_rotate %16 by %c32_i32 dim 1 : vector<2x128xf32>, i32 -> vector<2x128xf32>
    %21 = arith.mulf %19, %8 : vector<2x128xf32>
    %22 = arith.mulf %16, %18 : vector<2x128xf32>
    %23 = arith.addf %21, %22 : vector<2x128xf32>
    %24 = math.tanh %23 : vector<2x128xf32>
    %25 = arith.mulf %20, %24 : vector<2x128xf32>
    %c0_11 = arith.constant 0 : index
    %c0_12 = arith.constant 0 : index
    %26 = vector.load %arg10[%c0_11, %c0_12] : memref<16x128xf32, #tpu.memory_space<vmem>>, vector<2x128xf32>
    tpu.vector_store %arg10[%c0_11, %c0_12], %25 {strides = array<i32>} : memref<16x128xf32, #tpu.memory_space<vmem>>, vector<2x128xf32>,
    %27 = vector.extract_strided_slice %5 {offsets = [2, 0], sizes = [2, 128], strides = [1, 1]} : vector<16x128xf32> to vector<2x128xf32>
    %cst_13 = arith.constant dense<0.000000e+00> : vector<2x128xf32>
    %28 = tpu.matmul %25, %6, %cst_13 {dimension_numbers = #tpu.dot_dimension_numbers<[1], [0], [0], [1], [0, 0, 1, 1], [], []>} : vector<2x128xf32>, vector<128x128xf32>, vector<2x128xf32> -> vector<2x128xf32>
    %29 = arith.addf %27, %28 : vector<2x128xf32>
    %30 = arith.negf %29 : vector<2x128xf32>
    %31 = math.exp %30 : vector<2x128xf32>
    %cst_14 = arith.constant 1.000000e+00 : f32
    %32 = vector.broadcast %cst_14 : f32 to vector<2x128xf32>
    %33 = arith.addf %32, %31 : vector<2x128xf32>
    %34 = arith.divf %32, %33 : vector<2x128xf32>
    %35 = math.tanh %29 : vector<2x128xf32>
    %c64_i32_15 = arith.constant 64 : i32
    %36 = tpu.dynamic_rotate %35 by %c64_i32_15 dim 1 : vector<2x128xf32>, i32 -> vector<2x128xf32>
    %c96_i32_16 = arith.constant 96 : i32
    %37 = tpu.dynamic_rotate %34 by %c96_i32_16 dim 1 : vector<2x128xf32>, i32 -> vector<2x128xf32>
    %c32_i32_17 = arith.constant 32 : i32
    %38 = tpu.dynamic_rotate %34 by %c32_i32_17 dim 1 : vector<2x128xf32>, i32 -> vector<2x128xf32>
    %39 = arith.mulf %37, %23 : vector<2x128xf32>
    %40 = arith.mulf %34, %36 : vector<2x128xf32>
    %41 = arith.addf %39, %40 : vector<2x128xf32>
    %42 = math.tanh %41 : vector<2x128xf32>
    %43 = arith.mulf %38, %42 : vector<2x128xf32>
    %c2 = arith.constant 2 : index
    %c0_18 = arith.constant 0 : index
    %44 = vector.load %arg10[%c2, %c0_18] : memref<16x128xf32, #tpu.memory_space<vmem>>, vector<2x128xf32>
    tpu.vector_store %arg10[%c2, %c0_18], %43 {strides = array<i32>} : memref<16x128xf32, #tpu.memory_space<vmem>>, vector<2x128xf32>,
    %45 = vector.extract_strided_slice %5 {offsets = [4, 0], sizes = [2, 128], strides = [1, 1]} : vector<16x128xf32> to vector<2x128xf32>
    %cst_19 = arith.constant dense<0.000000e+00> : vector<2x128xf32>
    %46 = tpu.matmul %43, %6, %cst_19 {dimension_numbers = #tpu.dot_dimension_numbers<[1], [0], [0], [1], [0, 0, 1, 1], [], []>} : vector<2x128xf32>, vector<128x128xf32>, vector<2x128xf32> -> vector<2x128xf32>
    %47 = arith.addf %45, %46 : vector<2x128xf32>
    %48 = arith.negf %47 : vector<2x128xf32>
    %49 = math.exp %48 : vector<2x128xf32>
    %cst_20 = arith.constant 1.000000e+00 : f32
    %50 = vector.broadcast %cst_20 : f32 to vector<2x128xf32>
    %51 = arith.addf %50, %49 : vector<2x128xf32>
    %52 = arith.divf %50, %51 : vector<2x128xf32>
    %53 = math.tanh %47 : vector<2x128xf32>
    %c64_i32_21 = arith.constant 64 : i32
    %54 = tpu.dynamic_rotate %53 by %c64_i32_21 dim 1 : vector<2x128xf32>, i32 -> vector<2x128xf32>
    %c96_i32_22 = arith.constant 96 : i32
    %55 = tpu.dynamic_rotate %52 by %c96_i32_22 dim 1 : vector<2x128xf32>, i32 -> vector<2x128xf32>
    %c32_i32_23 = arith.constant 32 : i32
    %56 = tpu.dynamic_rotate %52 by %c32_i32_23 dim 1 : vector<2x128xf32>, i32 -> vector<2x128xf32>
    %57 = arith.mulf %55, %41 : vector<2x128xf32>
    %58 = arith.mulf %52, %54 : vector<2x128xf32>
    %59 = arith.addf %57, %58 : vector<2x128xf32>
    %60 = math.tanh %59 : vector<2x128xf32>
    %61 = arith.mulf %56, %60 : vector<2x128xf32>
    %c4 = arith.constant 4 : index
    %c0_24 = arith.constant 0 : index
    %62 = vector.load %arg10[%c4, %c0_24] : memref<16x128xf32, #tpu.memory_space<vmem>>, vector<2x128xf32>
    tpu.vector_store %arg10[%c4, %c0_24], %61 {strides = array<i32>} : memref<16x128xf32, #tpu.memory_space<vmem>>, vector<2x128xf32>,
    %63 = vector.extract_strided_slice %5 {offsets = [6, 0], sizes = [2, 128], strides = [1, 1]} : vector<16x128xf32> to vector<2x128xf32>
    %cst_25 = arith.constant dense<0.000000e+00> : vector<2x128xf32>
    %64 = tpu.matmul %61, %6, %cst_25 {dimension_numbers = #tpu.dot_dimension_numbers<[1], [0], [0], [1], [0, 0, 1, 1], [], []>} : vector<2x128xf32>, vector<128x128xf32>, vector<2x128xf32> -> vector<2x128xf32>
    %65 = arith.addf %63, %64 : vector<2x128xf32>
    %66 = arith.negf %65 : vector<2x128xf32>
    %67 = math.exp %66 : vector<2x128xf32>
    %cst_26 = arith.constant 1.000000e+00 : f32
    %68 = vector.broadcast %cst_26 : f32 to vector<2x128xf32>
    %69 = arith.addf %68, %67 : vector<2x128xf32>
    %70 = arith.divf %68, %69 : vector<2x128xf32>
    %71 = math.tanh %65 : vector<2x128xf32>
    %c64_i32_27 = arith.constant 64 : i32
    %72 = tpu.dynamic_rotate %71 by %c64_i32_27 dim 1 : vector<2x128xf32>, i32 -> vector<2x128xf32>
    %c96_i32_28 = arith.constant 96 : i32
    %73 = tpu.dynamic_rotate %70 by %c96_i32_28 dim 1 : vector<2x128xf32>, i32 -> vector<2x128xf32>
    %c32_i32_29 = arith.constant 32 : i32
    %74 = tpu.dynamic_rotate %70 by %c32_i32_29 dim 1 : vector<2x128xf32>, i32 -> vector<2x128xf32>
    %75 = arith.mulf %73, %59 : vector<2x128xf32>
    %76 = arith.mulf %70, %72 : vector<2x128xf32>
    %77 = arith.addf %75, %76 : vector<2x128xf32>
    %78 = math.tanh %77 : vector<2x128xf32>
    %79 = arith.mulf %74, %78 : vector<2x128xf32>
    %c6 = arith.constant 6 : index
    %c0_30 = arith.constant 0 : index
    %80 = vector.load %arg10[%c6, %c0_30] : memref<16x128xf32, #tpu.memory_space<vmem>>, vector<2x128xf32>
    tpu.vector_store %arg10[%c6, %c0_30], %79 {strides = array<i32>} : memref<16x128xf32, #tpu.memory_space<vmem>>, vector<2x128xf32>,
    %81 = vector.extract_strided_slice %5 {offsets = [8, 0], sizes = [2, 128], strides = [1, 1]} : vector<16x128xf32> to vector<2x128xf32>
    %cst_31 = arith.constant dense<0.000000e+00> : vector<2x128xf32>
    %82 = tpu.matmul %79, %6, %cst_31 {dimension_numbers = #tpu.dot_dimension_numbers<[1], [0], [0], [1], [0, 0, 1, 1], [], []>} : vector<2x128xf32>, vector<128x128xf32>, vector<2x128xf32> -> vector<2x128xf32>
    %83 = arith.addf %81, %82 : vector<2x128xf32>
    %84 = arith.negf %83 : vector<2x128xf32>
    %85 = math.exp %84 : vector<2x128xf32>
    %cst_32 = arith.constant 1.000000e+00 : f32
    %86 = vector.broadcast %cst_32 : f32 to vector<2x128xf32>
    %87 = arith.addf %86, %85 : vector<2x128xf32>
    %88 = arith.divf %86, %87 : vector<2x128xf32>
    %89 = math.tanh %83 : vector<2x128xf32>
    %c64_i32_33 = arith.constant 64 : i32
    %90 = tpu.dynamic_rotate %89 by %c64_i32_33 dim 1 : vector<2x128xf32>, i32 -> vector<2x128xf32>
    %c96_i32_34 = arith.constant 96 : i32
    %91 = tpu.dynamic_rotate %88 by %c96_i32_34 dim 1 : vector<2x128xf32>, i32 -> vector<2x128xf32>
    %c32_i32_35 = arith.constant 32 : i32
    %92 = tpu.dynamic_rotate %88 by %c32_i32_35 dim 1 : vector<2x128xf32>, i32 -> vector<2x128xf32>
    %93 = arith.mulf %91, %77 : vector<2x128xf32>
    %94 = arith.mulf %88, %90 : vector<2x128xf32>
    %95 = arith.addf %93, %94 : vector<2x128xf32>
    %96 = math.tanh %95 : vector<2x128xf32>
    %97 = arith.mulf %92, %96 : vector<2x128xf32>
    %c8 = arith.constant 8 : index
    %c0_36 = arith.constant 0 : index
    %98 = vector.load %arg10[%c8, %c0_36] : memref<16x128xf32, #tpu.memory_space<vmem>>, vector<2x128xf32>
    tpu.vector_store %arg10[%c8, %c0_36], %97 {strides = array<i32>} : memref<16x128xf32, #tpu.memory_space<vmem>>, vector<2x128xf32>,
    %99 = vector.extract_strided_slice %5 {offsets = [10, 0], sizes = [2, 128], strides = [1, 1]} : vector<16x128xf32> to vector<2x128xf32>
    %cst_37 = arith.constant dense<0.000000e+00> : vector<2x128xf32>
    %100 = tpu.matmul %97, %6, %cst_37 {dimension_numbers = #tpu.dot_dimension_numbers<[1], [0], [0], [1], [0, 0, 1, 1], [], []>} : vector<2x128xf32>, vector<128x128xf32>, vector<2x128xf32> -> vector<2x128xf32>
    %101 = arith.addf %99, %100 : vector<2x128xf32>
    %102 = arith.negf %101 : vector<2x128xf32>
    %103 = math.exp %102 : vector<2x128xf32>
    %cst_38 = arith.constant 1.000000e+00 : f32
    %104 = vector.broadcast %cst_38 : f32 to vector<2x128xf32>
    %105 = arith.addf %104, %103 : vector<2x128xf32>
    %106 = arith.divf %104, %105 : vector<2x128xf32>
    %107 = math.tanh %101 : vector<2x128xf32>
    %c64_i32_39 = arith.constant 64 : i32
    %108 = tpu.dynamic_rotate %107 by %c64_i32_39 dim 1 : vector<2x128xf32>, i32 -> vector<2x128xf32>
    %c96_i32_40 = arith.constant 96 : i32
    %109 = tpu.dynamic_rotate %106 by %c96_i32_40 dim 1 : vector<2x128xf32>, i32 -> vector<2x128xf32>
    %c32_i32_41 = arith.constant 32 : i32
    %110 = tpu.dynamic_rotate %106 by %c32_i32_41 dim 1 : vector<2x128xf32>, i32 -> vector<2x128xf32>
    %111 = arith.mulf %109, %95 : vector<2x128xf32>
    %112 = arith.mulf %106, %108 : vector<2x128xf32>
    %113 = arith.addf %111, %112 : vector<2x128xf32>
    %114 = math.tanh %113 : vector<2x128xf32>
    %115 = arith.mulf %110, %114 : vector<2x128xf32>
    %c10 = arith.constant 10 : index
    %c0_42 = arith.constant 0 : index
    %116 = vector.load %arg10[%c10, %c0_42] : memref<16x128xf32, #tpu.memory_space<vmem>>, vector<2x128xf32>
    tpu.vector_store %arg10[%c10, %c0_42], %115 {strides = array<i32>} : memref<16x128xf32, #tpu.memory_space<vmem>>, vector<2x128xf32>,
    %117 = vector.extract_strided_slice %5 {offsets = [12, 0], sizes = [2, 128], strides = [1, 1]} : vector<16x128xf32> to vector<2x128xf32>
    %cst_43 = arith.constant dense<0.000000e+00> : vector<2x128xf32>
    %118 = tpu.matmul %115, %6, %cst_43 {dimension_numbers = #tpu.dot_dimension_numbers<[1], [0], [0], [1], [0, 0, 1, 1], [], []>} : vector<2x128xf32>, vector<128x128xf32>, vector<2x128xf32> -> vector<2x128xf32>
    %119 = arith.addf %117, %118 : vector<2x128xf32>
    %120 = arith.negf %119 : vector<2x128xf32>
    %121 = math.exp %120 : vector<2x128xf32>
    %cst_44 = arith.constant 1.000000e+00 : f32
    %122 = vector.broadcast %cst_44 : f32 to vector<2x128xf32>
    %123 = arith.addf %122, %121 : vector<2x128xf32>
    %124 = arith.divf %122, %123 : vector<2x128xf32>
    %125 = math.tanh %119 : vector<2x128xf32>
    %c64_i32_45 = arith.constant 64 : i32
    %126 = tpu.dynamic_rotate %125 by %c64_i32_45 dim 1 : vector<2x128xf32>, i32 -> vector<2x128xf32>
    %c96_i32_46 = arith.constant 96 : i32
    %127 = tpu.dynamic_rotate %124 by %c96_i32_46 dim 1 : vector<2x128xf32>, i32 -> vector<2x128xf32>
    %c32_i32_47 = arith.constant 32 : i32
    %128 = tpu.dynamic_rotate %124 by %c32_i32_47 dim 1 : vector<2x128xf32>, i32 -> vector<2x128xf32>
    %129 = arith.mulf %127, %113 : vector<2x128xf32>
    %130 = arith.mulf %124, %126 : vector<2x128xf32>
    %131 = arith.addf %129, %130 : vector<2x128xf32>
    %132 = math.tanh %131 : vector<2x128xf32>
    %133 = arith.mulf %128, %132 : vector<2x128xf32>
    %c12 = arith.constant 12 : index
    %c0_48 = arith.constant 0 : index
    %134 = vector.load %arg10[%c12, %c0_48] : memref<16x128xf32, #tpu.memory_space<vmem>>, vector<2x128xf32>
    tpu.vector_store %arg10[%c12, %c0_48], %133 {strides = array<i32>} : memref<16x128xf32, #tpu.memory_space<vmem>>, vector<2x128xf32>,
    %135 = vector.extract_strided_slice %5 {offsets = [14, 0], sizes = [2, 128], strides = [1, 1]} : vector<16x128xf32> to vector<2x128xf32>
    %cst_49 = arith.constant dense<0.000000e+00> : vector<2x128xf32>
    %136 = tpu.matmul %133, %6, %cst_49 {dimension_numbers = #tpu.dot_dimension_numbers<[1], [0], [0], [1], [0, 0, 1, 1], [], []>} : vector<2x128xf32>, vector<128x128xf32>, vector<2x128xf32> -> vector<2x128xf32>
    %137 = arith.addf %135, %136 : vector<2x128xf32>
    %138 = arith.negf %137 : vector<2x128xf32>
    %139 = math.exp %138 : vector<2x128xf32>
    %cst_50 = arith.constant 1.000000e+00 : f32
    %140 = vector.broadcast %cst_50 : f32 to vector<2x128xf32>
    %141 = arith.addf %140, %139 : vector<2x128xf32>
    %142 = arith.divf %140, %141 : vector<2x128xf32>
    %143 = math.tanh %137 : vector<2x128xf32>
    %c64_i32_51 = arith.constant 64 : i32
    %144 = tpu.dynamic_rotate %143 by %c64_i32_51 dim 1 : vector<2x128xf32>, i32 -> vector<2x128xf32>
    %c96_i32_52 = arith.constant 96 : i32
    %145 = tpu.dynamic_rotate %142 by %c96_i32_52 dim 1 : vector<2x128xf32>, i32 -> vector<2x128xf32>
    %c32_i32_53 = arith.constant 32 : i32
    %146 = tpu.dynamic_rotate %142 by %c32_i32_53 dim 1 : vector<2x128xf32>, i32 -> vector<2x128xf32>
    %147 = arith.mulf %145, %131 : vector<2x128xf32>
    %148 = arith.mulf %142, %144 : vector<2x128xf32>
    %149 = arith.addf %147, %148 : vector<2x128xf32>
    %150 = math.tanh %149 : vector<2x128xf32>
    %151 = arith.mulf %146, %150 : vector<2x128xf32>
    %c14 = arith.constant 14 : index
    %c0_54 = arith.constant 0 : index
    %152 = vector.load %arg10[%c14, %c0_54] : memref<16x128xf32, #tpu.memory_space<vmem>>, vector<2x128xf32>
    tpu.vector_store %arg10[%c14, %c0_54], %151 {strides = array<i32>} : memref<16x128xf32, #tpu.memory_space<vmem>>, vector<2x128xf32>,
    %c0_55 = arith.constant 0 : index
    %c0_56 = arith.constant 0 : index
    %153 = vector.load %arg10[%c0_55, %c0_56] : memref<16x128xf32, #tpu.memory_space<vmem>>, vector<16x128xf32>
    %c0_57 = arith.constant 0 : index
    %c0_58 = arith.constant 0 : index
    %154 = vector.load %arg4[%c0_57, %c0_58] : memref<128x128xf32, #tpu.memory_space<vmem>>, vector<128x128xf32>
    %cst_59 = arith.constant dense<0.000000e+00> : vector<16x128xf32>
    %155 = tpu.matmul %153, %154, %cst_59 {dimension_numbers = #tpu.dot_dimension_numbers<[1], [0], [0], [1], [0, 0, 1, 1], [], []>} : vector<16x128xf32>, vector<128x128xf32>, vector<16x128xf32> -> vector<16x128xf32>
    %c0_60 = arith.constant 0 : index
    %c0_61 = arith.constant 0 : index
    %156 = vector.load %arg6[%c0_60, %c0_61] : memref<1x128xf32, #tpu.memory_space<vmem>>, vector<1x128xf32>
    %157 = vector.broadcast %156 : vector<1x128xf32> to vector<16x128xf32>
    %158 = arith.addf %155, %157 : vector<16x128xf32>
    %c0_62 = arith.constant 0 : index
    %c0_63 = arith.constant 0 : index
    %159 = vector.load %arg5[%c0_62, %c0_63] : memref<128x128xf32, #tpu.memory_space<vmem>>, vector<128x128xf32>
    %cst_64 = arith.constant 0.000000e+00 : f32
    %160 = vector.broadcast %cst_64 : f32 to vector<2x128xf32>
    %cst_65 = arith.constant 0.000000e+00 : f32
    %161 = vector.broadcast %cst_65 : f32 to vector<2x128xf32>
    %162 = vector.extract_strided_slice %158 {offsets = [0, 0], sizes = [2, 128], strides = [1, 1]} : vector<16x128xf32> to vector<2x128xf32>
    %cst_66 = arith.constant dense<0.000000e+00> : vector<2x128xf32>
    %163 = tpu.matmul %160, %159, %cst_66 {dimension_numbers = #tpu.dot_dimension_numbers<[1], [0], [0], [1], [0, 0, 1, 1], [], []>} : vector<2x128xf32>, vector<128x128xf32>, vector<2x128xf32> -> vector<2x128xf32>
    %164 = arith.addf %162, %163 : vector<2x128xf32>
    %165 = arith.negf %164 : vector<2x128xf32>
    %166 = math.exp %165 : vector<2x128xf32>
    %cst_67 = arith.constant 1.000000e+00 : f32
    %167 = vector.broadcast %cst_67 : f32 to vector<2x128xf32>
    %168 = arith.addf %167, %166 : vector<2x128xf32>
    %169 = arith.divf %167, %168 : vector<2x128xf32>
    %170 = math.tanh %164 : vector<2x128xf32>
    %c64_i32_68 = arith.constant 64 : i32
    %171 = tpu.dynamic_rotate %170 by %c64_i32_68 dim 1 : vector<2x128xf32>, i32 -> vector<2x128xf32>
    %c96_i32_69 = arith.constant 96 : i32
    %172 = tpu.dynamic_rotate %169 by %c96_i32_69 dim 1 : vector<2x128xf32>, i32 -> vector<2x128xf32>
    %c32_i32_70 = arith.constant 32 : i32
    %173 = tpu.dynamic_rotate %169 by %c32_i32_70 dim 1 : vector<2x128xf32>, i32 -> vector<2x128xf32>
    %174 = arith.mulf %172, %161 : vector<2x128xf32>
    %175 = arith.mulf %169, %171 : vector<2x128xf32>
    %176 = arith.addf %174, %175 : vector<2x128xf32>
    %177 = math.tanh %176 : vector<2x128xf32>
    %178 = arith.mulf %173, %177 : vector<2x128xf32>
    %c0_71 = arith.constant 0 : index
    %c0_72 = arith.constant 0 : index
    %179 = vector.load %arg11[%c0_71, %c0_72] : memref<16x128xf32, #tpu.memory_space<vmem>>, vector<2x128xf32>
    tpu.vector_store %arg11[%c0_71, %c0_72], %178 {strides = array<i32>} : memref<16x128xf32, #tpu.memory_space<vmem>>, vector<2x128xf32>,
    %180 = vector.extract_strided_slice %158 {offsets = [2, 0], sizes = [2, 128], strides = [1, 1]} : vector<16x128xf32> to vector<2x128xf32>
    %cst_73 = arith.constant dense<0.000000e+00> : vector<2x128xf32>
    %181 = tpu.matmul %178, %159, %cst_73 {dimension_numbers = #tpu.dot_dimension_numbers<[1], [0], [0], [1], [0, 0, 1, 1], [], []>} : vector<2x128xf32>, vector<128x128xf32>, vector<2x128xf32> -> vector<2x128xf32>
    %182 = arith.addf %180, %181 : vector<2x128xf32>
    %183 = arith.negf %182 : vector<2x128xf32>
    %184 = math.exp %183 : vector<2x128xf32>
    %cst_74 = arith.constant 1.000000e+00 : f32
    %185 = vector.broadcast %cst_74 : f32 to vector<2x128xf32>
    %186 = arith.addf %185, %184 : vector<2x128xf32>
    %187 = arith.divf %185, %186 : vector<2x128xf32>
    %188 = math.tanh %182 : vector<2x128xf32>
    %c64_i32_75 = arith.constant 64 : i32
    %189 = tpu.dynamic_rotate %188 by %c64_i32_75 dim 1 : vector<2x128xf32>, i32 -> vector<2x128xf32>
    %c96_i32_76 = arith.constant 96 : i32
    %190 = tpu.dynamic_rotate %187 by %c96_i32_76 dim 1 : vector<2x128xf32>, i32 -> vector<2x128xf32>
    %c32_i32_77 = arith.constant 32 : i32
    %191 = tpu.dynamic_rotate %187 by %c32_i32_77 dim 1 : vector<2x128xf32>, i32 -> vector<2x128xf32>
    %192 = arith.mulf %190, %176 : vector<2x128xf32>
    %193 = arith.mulf %187, %189 : vector<2x128xf32>
    %194 = arith.addf %192, %193 : vector<2x128xf32>
    %195 = math.tanh %194 : vector<2x128xf32>
    %196 = arith.mulf %191, %195 : vector<2x128xf32>
    %c2_78 = arith.constant 2 : index
    %c0_79 = arith.constant 0 : index
    %197 = vector.load %arg11[%c2_78, %c0_79] : memref<16x128xf32, #tpu.memory_space<vmem>>, vector<2x128xf32>
    tpu.vector_store %arg11[%c2_78, %c0_79], %196 {strides = array<i32>} : memref<16x128xf32, #tpu.memory_space<vmem>>, vector<2x128xf32>,
    %198 = vector.extract_strided_slice %158 {offsets = [4, 0], sizes = [2, 128], strides = [1, 1]} : vector<16x128xf32> to vector<2x128xf32>
    %cst_80 = arith.constant dense<0.000000e+00> : vector<2x128xf32>
    %199 = tpu.matmul %196, %159, %cst_80 {dimension_numbers = #tpu.dot_dimension_numbers<[1], [0], [0], [1], [0, 0, 1, 1], [], []>} : vector<2x128xf32>, vector<128x128xf32>, vector<2x128xf32> -> vector<2x128xf32>
    %200 = arith.addf %198, %199 : vector<2x128xf32>
    %201 = arith.negf %200 : vector<2x128xf32>
    %202 = math.exp %201 : vector<2x128xf32>
    %cst_81 = arith.constant 1.000000e+00 : f32
    %203 = vector.broadcast %cst_81 : f32 to vector<2x128xf32>
    %204 = arith.addf %203, %202 : vector<2x128xf32>
    %205 = arith.divf %203, %204 : vector<2x128xf32>
    %206 = math.tanh %200 : vector<2x128xf32>
    %c64_i32_82 = arith.constant 64 : i32
    %207 = tpu.dynamic_rotate %206 by %c64_i32_82 dim 1 : vector<2x128xf32>, i32 -> vector<2x128xf32>
    %c96_i32_83 = arith.constant 96 : i32
    %208 = tpu.dynamic_rotate %205 by %c96_i32_83 dim 1 : vector<2x128xf32>, i32 -> vector<2x128xf32>
    %c32_i32_84 = arith.constant 32 : i32
    %209 = tpu.dynamic_rotate %205 by %c32_i32_84 dim 1 : vector<2x128xf32>, i32 -> vector<2x128xf32>
    %210 = arith.mulf %208, %194 : vector<2x128xf32>
    %211 = arith.mulf %205, %207 : vector<2x128xf32>
    %212 = arith.addf %210, %211 : vector<2x128xf32>
    %213 = math.tanh %212 : vector<2x128xf32>
    %214 = arith.mulf %209, %213 : vector<2x128xf32>
    %c4_85 = arith.constant 4 : index
    %c0_86 = arith.constant 0 : index
    %215 = vector.load %arg11[%c4_85, %c0_86] : memref<16x128xf32, #tpu.memory_space<vmem>>, vector<2x128xf32>
    tpu.vector_store %arg11[%c4_85, %c0_86], %214 {strides = array<i32>} : memref<16x128xf32, #tpu.memory_space<vmem>>, vector<2x128xf32>,
    %216 = vector.extract_strided_slice %158 {offsets = [6, 0], sizes = [2, 128], strides = [1, 1]} : vector<16x128xf32> to vector<2x128xf32>
    %cst_87 = arith.constant dense<0.000000e+00> : vector<2x128xf32>
    %217 = tpu.matmul %214, %159, %cst_87 {dimension_numbers = #tpu.dot_dimension_numbers<[1], [0], [0], [1], [0, 0, 1, 1], [], []>} : vector<2x128xf32>, vector<128x128xf32>, vector<2x128xf32> -> vector<2x128xf32>
    %218 = arith.addf %216, %217 : vector<2x128xf32>
    %219 = arith.negf %218 : vector<2x128xf32>
    %220 = math.exp %219 : vector<2x128xf32>
    %cst_88 = arith.constant 1.000000e+00 : f32
    %221 = vector.broadcast %cst_88 : f32 to vector<2x128xf32>
    %222 = arith.addf %221, %220 : vector<2x128xf32>
    %223 = arith.divf %221, %222 : vector<2x128xf32>
    %224 = math.tanh %218 : vector<2x128xf32>
    %c64_i32_89 = arith.constant 64 : i32
    %225 = tpu.dynamic_rotate %224 by %c64_i32_89 dim 1 : vector<2x128xf32>, i32 -> vector<2x128xf32>
    %c96_i32_90 = arith.constant 96 : i32
    %226 = tpu.dynamic_rotate %223 by %c96_i32_90 dim 1 : vector<2x128xf32>, i32 -> vector<2x128xf32>
    %c32_i32_91 = arith.constant 32 : i32
    %227 = tpu.dynamic_rotate %223 by %c32_i32_91 dim 1 : vector<2x128xf32>, i32 -> vector<2x128xf32>
    %228 = arith.mulf %226, %212 : vector<2x128xf32>
    %229 = arith.mulf %223, %225 : vector<2x128xf32>
    %230 = arith.addf %228, %229 : vector<2x128xf32>
    %231 = math.tanh %230 : vector<2x128xf32>
    %232 = arith.mulf %227, %231 : vector<2x128xf32>
    %c6_92 = arith.constant 6 : index
    %c0_93 = arith.constant 0 : index
    %233 = vector.load %arg11[%c6_92, %c0_93] : memref<16x128xf32, #tpu.memory_space<vmem>>, vector<2x128xf32>
    tpu.vector_store %arg11[%c6_92, %c0_93], %232 {strides = array<i32>} : memref<16x128xf32, #tpu.memory_space<vmem>>, vector<2x128xf32>,
    %234 = vector.extract_strided_slice %158 {offsets = [8, 0], sizes = [2, 128], strides = [1, 1]} : vector<16x128xf32> to vector<2x128xf32>
    %cst_94 = arith.constant dense<0.000000e+00> : vector<2x128xf32>
    %235 = tpu.matmul %232, %159, %cst_94 {dimension_numbers = #tpu.dot_dimension_numbers<[1], [0], [0], [1], [0, 0, 1, 1], [], []>} : vector<2x128xf32>, vector<128x128xf32>, vector<2x128xf32> -> vector<2x128xf32>
    %236 = arith.addf %234, %235 : vector<2x128xf32>
    %237 = arith.negf %236 : vector<2x128xf32>
    %238 = math.exp %237 : vector<2x128xf32>
    %cst_95 = arith.constant 1.000000e+00 : f32
    %239 = vector.broadcast %cst_95 : f32 to vector<2x128xf32>
    %240 = arith.addf %239, %238 : vector<2x128xf32>
    %241 = arith.divf %239, %240 : vector<2x128xf32>
    %242 = math.tanh %236 : vector<2x128xf32>
    %c64_i32_96 = arith.constant 64 : i32
    %243 = tpu.dynamic_rotate %242 by %c64_i32_96 dim 1 : vector<2x128xf32>, i32 -> vector<2x128xf32>
    %c96_i32_97 = arith.constant 96 : i32
    %244 = tpu.dynamic_rotate %241 by %c96_i32_97 dim 1 : vector<2x128xf32>, i32 -> vector<2x128xf32>
    %c32_i32_98 = arith.constant 32 : i32
    %245 = tpu.dynamic_rotate %241 by %c32_i32_98 dim 1 : vector<2x128xf32>, i32 -> vector<2x128xf32>
    %246 = arith.mulf %244, %230 : vector<2x128xf32>
    %247 = arith.mulf %241, %243 : vector<2x128xf32>
    %248 = arith.addf %246, %247 : vector<2x128xf32>
    %249 = math.tanh %248 : vector<2x128xf32>
    %250 = arith.mulf %245, %249 : vector<2x128xf32>
    %c8_99 = arith.constant 8 : index
    %c0_100 = arith.constant 0 : index
    %251 = vector.load %arg11[%c8_99, %c0_100] : memref<16x128xf32, #tpu.memory_space<vmem>>, vector<2x128xf32>
    tpu.vector_store %arg11[%c8_99, %c0_100], %250 {strides = array<i32>} : memref<16x128xf32, #tpu.memory_space<vmem>>, vector<2x128xf32>,
    %252 = vector.extract_strided_slice %158 {offsets = [10, 0], sizes = [2, 128], strides = [1, 1]} : vector<16x128xf32> to vector<2x128xf32>
    %cst_101 = arith.constant dense<0.000000e+00> : vector<2x128xf32>
    %253 = tpu.matmul %250, %159, %cst_101 {dimension_numbers = #tpu.dot_dimension_numbers<[1], [0], [0], [1], [0, 0, 1, 1], [], []>} : vector<2x128xf32>, vector<128x128xf32>, vector<2x128xf32> -> vector<2x128xf32>
    %254 = arith.addf %252, %253 : vector<2x128xf32>
    %255 = arith.negf %254 : vector<2x128xf32>
    %256 = math.exp %255 : vector<2x128xf32>
    %cst_102 = arith.constant 1.000000e+00 : f32
    %257 = vector.broadcast %cst_102 : f32 to vector<2x128xf32>
    %258 = arith.addf %257, %256 : vector<2x128xf32>
    %259 = arith.divf %257, %258 : vector<2x128xf32>
    %260 = math.tanh %254 : vector<2x128xf32>
    %c64_i32_103 = arith.constant 64 : i32
    %261 = tpu.dynamic_rotate %260 by %c64_i32_103 dim 1 : vector<2x128xf32>, i32 -> vector<2x128xf32>
    %c96_i32_104 = arith.constant 96 : i32
    %262 = tpu.dynamic_rotate %259 by %c96_i32_104 dim 1 : vector<2x128xf32>, i32 -> vector<2x128xf32>
    %c32_i32_105 = arith.constant 32 : i32
    %263 = tpu.dynamic_rotate %259 by %c32_i32_105 dim 1 : vector<2x128xf32>, i32 -> vector<2x128xf32>
    %264 = arith.mulf %262, %248 : vector<2x128xf32>
    %265 = arith.mulf %259, %261 : vector<2x128xf32>
    %266 = arith.addf %264, %265 : vector<2x128xf32>
    %267 = math.tanh %266 : vector<2x128xf32>
    %268 = arith.mulf %263, %267 : vector<2x128xf32>
    %c10_106 = arith.constant 10 : index
    %c0_107 = arith.constant 0 : index
    %269 = vector.load %arg11[%c10_106, %c0_107] : memref<16x128xf32, #tpu.memory_space<vmem>>, vector<2x128xf32>
    tpu.vector_store %arg11[%c10_106, %c0_107], %268 {strides = array<i32>} : memref<16x128xf32, #tpu.memory_space<vmem>>, vector<2x128xf32>,
    %270 = vector.extract_strided_slice %158 {offsets = [12, 0], sizes = [2, 128], strides = [1, 1]} : vector<16x128xf32> to vector<2x128xf32>
    %cst_108 = arith.constant dense<0.000000e+00> : vector<2x128xf32>
    %271 = tpu.matmul %268, %159, %cst_108 {dimension_numbers = #tpu.dot_dimension_numbers<[1], [0], [0], [1], [0, 0, 1, 1], [], []>} : vector<2x128xf32>, vector<128x128xf32>, vector<2x128xf32> -> vector<2x128xf32>
    %272 = arith.addf %270, %271 : vector<2x128xf32>
    %273 = arith.negf %272 : vector<2x128xf32>
    %274 = math.exp %273 : vector<2x128xf32>
    %cst_109 = arith.constant 1.000000e+00 : f32
    %275 = vector.broadcast %cst_109 : f32 to vector<2x128xf32>
    %276 = arith.addf %275, %274 : vector<2x128xf32>
    %277 = arith.divf %275, %276 : vector<2x128xf32>
    %278 = math.tanh %272 : vector<2x128xf32>
    %c64_i32_110 = arith.constant 64 : i32
    %279 = tpu.dynamic_rotate %278 by %c64_i32_110 dim 1 : vector<2x128xf32>, i32 -> vector<2x128xf32>
    %c96_i32_111 = arith.constant 96 : i32
    %280 = tpu.dynamic_rotate %277 by %c96_i32_111 dim 1 : vector<2x128xf32>, i32 -> vector<2x128xf32>
    %c32_i32_112 = arith.constant 32 : i32
    %281 = tpu.dynamic_rotate %277 by %c32_i32_112 dim 1 : vector<2x128xf32>, i32 -> vector<2x128xf32>
    %282 = arith.mulf %280, %266 : vector<2x128xf32>
    %283 = arith.mulf %277, %279 : vector<2x128xf32>
    %284 = arith.addf %282, %283 : vector<2x128xf32>
    %285 = math.tanh %284 : vector<2x128xf32>
    %286 = arith.mulf %281, %285 : vector<2x128xf32>
    %c12_113 = arith.constant 12 : index
    %c0_114 = arith.constant 0 : index
    %287 = vector.load %arg11[%c12_113, %c0_114] : memref<16x128xf32, #tpu.memory_space<vmem>>, vector<2x128xf32>
    tpu.vector_store %arg11[%c12_113, %c0_114], %286 {strides = array<i32>} : memref<16x128xf32, #tpu.memory_space<vmem>>, vector<2x128xf32>,
    %288 = vector.extract_strided_slice %158 {offsets = [14, 0], sizes = [2, 128], strides = [1, 1]} : vector<16x128xf32> to vector<2x128xf32>
    %cst_115 = arith.constant dense<0.000000e+00> : vector<2x128xf32>
    %289 = tpu.matmul %286, %159, %cst_115 {dimension_numbers = #tpu.dot_dimension_numbers<[1], [0], [0], [1], [0, 0, 1, 1], [], []>} : vector<2x128xf32>, vector<128x128xf32>, vector<2x128xf32> -> vector<2x128xf32>
    %290 = arith.addf %288, %289 : vector<2x128xf32>
    %291 = arith.negf %290 : vector<2x128xf32>
    %292 = math.exp %291 : vector<2x128xf32>
    %cst_116 = arith.constant 1.000000e+00 : f32
    %293 = vector.broadcast %cst_116 : f32 to vector<2x128xf32>
    %294 = arith.addf %293, %292 : vector<2x128xf32>
    %295 = arith.divf %293, %294 : vector<2x128xf32>
    %296 = math.tanh %290 : vector<2x128xf32>
    %c64_i32_117 = arith.constant 64 : i32
    %297 = tpu.dynamic_rotate %296 by %c64_i32_117 dim 1 : vector<2x128xf32>, i32 -> vector<2x128xf32>
    %c96_i32_118 = arith.constant 96 : i32
    %298 = tpu.dynamic_rotate %295 by %c96_i32_118 dim 1 : vector<2x128xf32>, i32 -> vector<2x128xf32>
    %c32_i32_119 = arith.constant 32 : i32
    %299 = tpu.dynamic_rotate %295 by %c32_i32_119 dim 1 : vector<2x128xf32>, i32 -> vector<2x128xf32>
    %300 = arith.mulf %298, %284 : vector<2x128xf32>
    %301 = arith.mulf %295, %297 : vector<2x128xf32>
    %302 = arith.addf %300, %301 : vector<2x128xf32>
    %303 = math.tanh %302 : vector<2x128xf32>
    %304 = arith.mulf %299, %303 : vector<2x128xf32>
    %c14_120 = arith.constant 14 : index
    %c0_121 = arith.constant 0 : index
    %305 = vector.load %arg11[%c14_120, %c0_121] : memref<16x128xf32, #tpu.memory_space<vmem>>, vector<2x128xf32>
    tpu.vector_store %arg11[%c14_120, %c0_121], %304 {strides = array<i32>} : memref<16x128xf32, #tpu.memory_space<vmem>>, vector<2x128xf32>,
    %c0_122 = arith.constant 0 : index
    %c0_123 = arith.constant 0 : index
    %306 = vector.load %arg11[%c0_122, %c0_123] : memref<16x128xf32, #tpu.memory_space<vmem>>, vector<16x128xf32>
    %c0_124 = arith.constant 0 : index
    %c0_125 = arith.constant 0 : index
    %307 = vector.load %arg7[%c0_124, %c0_125] : memref<128x26xf32, #tpu.memory_space<vmem>>, vector<128x26xf32>
    %cst_126 = arith.constant dense<0.000000e+00> : vector<16x26xf32>
    %308 = tpu.matmul %306, %307, %cst_126 {dimension_numbers = #tpu.dot_dimension_numbers<[1], [0], [0], [1], [0, 0, 1, 1], [], []>} : vector<16x128xf32>, vector<128x26xf32>, vector<16x26xf32> -> vector<16x26xf32>
    %c0_127 = arith.constant 0 : index
    %c0_128 = arith.constant 0 : index
    %309 = vector.load %arg8[%c0_127, %c0_128] : memref<1x26xf32, #tpu.memory_space<vmem>>, vector<1x26xf32>
    %310 = vector.broadcast %309 : vector<1x26xf32> to vector<16x26xf32>
    %311 = arith.addf %308, %310 : vector<16x26xf32>
    %c0_129 = arith.constant 0 : index
    %c0_130 = arith.constant 0 : index
    %312 = vector.load %arg9[%c0_129, %c0_130] : memref<16x26xf32, #tpu.memory_space<vmem>>, vector<16x26xf32>
    tpu.vector_store %arg9[%c0_129, %c0_130], %311 {strides = array<i32>} : memref<16x26xf32, #tpu.memory_space<vmem>>, vector<16x26xf32>,
    return
  }
}

</mosaic_0001>

<llo_original>
// kernel: recurrent_model_forward.1
$region0: #{recurrent_model_forward.1}
  #allocation0 [shape = 'u32[]', space=smem, size = 0x4, offset = 0x4, fixed_abs, tag = 'smem constant byte address 0x4 - core index']
  #allocation1 [shape = 'u32[72,128]{1,0:T(1,128)}', space=vmem, size = 0x9000, scoped, tag = 'internal scratch']
  #allocation2 [shape = 'f32[16,128]{1,0:T(8,128)}', space=vmem, size = 0x2000, scoped, tag = 'scratch operand']
  #allocation3 [shape = 'f32[16,128]{1,0:T(8,128)}', space=vmem, size = 0x2000, scoped, tag = 'scratch operand']
  %s0 = inlined_call_operand.vmem [shape: f32[16,64], index: 0, kind: input, shape index: {}]
  %s1 = inlined_call_operand.hbm [shape: f32[64,128], index: 1, kind: input, shape index: {}]
  %s2 = inlined_call_operand.vmem [shape: f32[128,128], index: 2, kind: input, shape index: {}]
  %s3 = inlined_call_operand.vmem [shape: f32[1,128], index: 3, kind: input, shape index: {}]
  %s4 = inlined_call_operand.vmem [shape: f32[128,128], index: 4, kind: input, shape index: {}]
  %s5 = inlined_call_operand.hbm [shape: f32[128,128], index: 5, kind: input, shape index: {}]
  %s6 = inlined_call_operand.vmem [shape: f32[1,128], index: 6, kind: input, shape index: {}]
  %s7 = inlined_call_operand.vmem [shape: f32[128,26], index: 7, kind: input, shape index: {}]
  %s8 = inlined_call_operand.vmem [shape: f32[1,26], index: 8, kind: input, shape index: {}]
  %s9 = inlined_call_operand.vmem [shape: f32[16,26], index: 9, kind: output, shape index: {}]
  %s10 = sld [smem:[#allocation0]]
  $region54: #{recurrent_model_forward.1} parent=0
    _
  %s12 = ssub.s32 1, %s10
  %s13 = scalar_select 0, %s12, %s10
  $region1: #{recurrent_model_forward.1} parent=0
    #allocation4 [shape = 'u8[32768]{0}', space=vmem, size = 0x8000, scoped, tag = 'input window, operand 1, single buffered']
    #allocation5 [shape = 's32[1]{0}', space=sflag, size = 0x4, scoped, tag = 'scoped memory for recurrent_model_forward.1']
    #allocation6 [shape = 'u8[65536]{0}', space=vmem, size = 0x10000, scoped, tag = 'input window, operand 5, single buffered']
    #allocation7 [shape = 's32[1]{0}', space=sflag, size = 0x4, scoped, tag = 'scoped memory for recurrent_model_forward.1']
    %14 = vsyncpa [#allocation5], 0
    %15 = vsyncpa [#allocation7], 0
    // Predicated region
    $region2: #{recurrent_model_forward.1} parent=1 // pred_check
      _
    $region3: #{recurrent_model_forward.1} parent=1 // pred_check_branch
      %17 = sbr.rel (0) target = $region5
    $region4: #{recurrent_model_forward.1} parent=1 // pred_region
      _
    $region5: #{recurrent_model_forward.1} parent=1 // pred_fallthru
      _
    // Predicated region
    $region6: #{recurrent_model_forward.1} parent=1 // pred_check
      _
    $region7: #{recurrent_model_forward.1} parent=1 // pred_check_branch
      %19 = sbr.rel (0) target = $region9
    $region8: #{recurrent_model_forward.1} parent=1 // pred_region
      %21 = vsyncadd [#allocation5], 0
      %s22 = sshll.u32 %s1, 4
      %s23 = int_to_ptr.hbm [resolvable:$true] %s22
      %s24 = sshll.u32 [#allocation4], 4
      %s25 = int_to_ptr.vmem [resolvable:$true] %s24
      %30 = dma.hbm_to_vmem [thread:$0]  %s23, 1024, %s25, [#allocation5], 128, 128, 8
    $region9: #{recurrent_model_forward.1} parent=1 // pred_fallthru
      _
    // Predicated region
    $region10: #{recurrent_model_forward.1} parent=1 // pred_check
      _
    $region11: #{recurrent_model_forward.1} parent=1 // pred_check_branch
      %32 = sbr.rel (0) target = $region13
    $region12: #{recurrent_model_forward.1} parent=1 // pred_region
      _
    $region13: #{recurrent_model_forward.1} parent=1 // pred_fallthru
      _
    // Predicated region
    $region14: #{recurrent_model_forward.1} parent=1 // pred_check
      _
    $region15: #{recurrent_model_forward.1} parent=1 // pred_check_branch
      %34 = sbr.rel (0) target = $region17
    $region16: #{recurrent_model_forward.1} parent=1 // pred_region
      _
    $region17: #{recurrent_model_forward.1} parent=1 // pred_fallthru
      _
    // Predicated region
    $region18: #{recurrent_model_forward.1} parent=1 // pred_check
      _
    $region19: #{recurrent_model_forward.1} parent=1 // pred_check_branch
      %36 = sbr.rel (0) target = $region21
    $region20: #{recurrent_model_forward.1} parent=1 // pred_region
      _
    $region21: #{recurrent_model_forward.1} parent=1 // pred_fallthru
      _
    // Predicated region
    $region22: #{recurrent_model_forward.1} parent=1 // pred_check
      _
    $region23: #{recurrent_model_forward.1} parent=1 // pred_check_branch
      %38 = sbr.rel (0) target = $region25
    $region24: #{recurrent_model_forward.1} parent=1 // pred_region
      %40 = vsyncadd [#allocation7], 0
      %s41 = sshll.u32 %s5, 4
      %s42 = int_to_ptr.hbm [resolvable:$true] %s41
      %s43 = sshll.u32 [#allocation6], 4
      %s44 = int_to_ptr.vmem [resolvable:$true] %s43
      %49 = dma.hbm_to_vmem [thread:$0]  %s42, 2048, %s44, [#allocation7], 128, 128, 8
    $region25: #{recurrent_model_forward.1} parent=1 // pred_fallthru
      _
    // Predicated region
    $region26: #{recurrent_model_forward.1} parent=1 // pred_check
      _
    $region27: #{recurrent_model_forward.1} parent=1 // pred_check_branch
      %51 = sbr.rel (0) target = $region29
    $region28: #{recurrent_model_forward.1} parent=1 // pred_region
      _
    $region29: #{recurrent_model_forward.1} parent=1 // pred_fallthru
      _
    // Predicated region
    $region30: #{recurrent_model_forward.1} parent=1 // pred_check
      _
    $region31: #{recurrent_model_forward.1} parent=1 // pred_check_branch
      %53 = sbr.rel (0) target = $region33
    $region32: #{recurrent_model_forward.1} parent=1 // pred_region
      _
    $region33: #{recurrent_model_forward.1} parent=1 // pred_fallthru
      _
    // Predicated region
    $region34: #{recurrent_model_forward.1} parent=1 // pred_check
      _
    $region35: #{recurrent_model_forward.1} parent=1 // pred_check_branch
      %55 = sbr.rel (0) target = $region37
    $region36: #{recurrent_model_forward.1} parent=1 // pred_region
      _
    $region37: #{recurrent_model_forward.1} parent=1 // pred_fallthru
      _
    // Predicated region
    $region38: #{recurrent_model_forward.1} parent=1 // pred_check
      _
    $region39: #{recurrent_model_forward.1} parent=1 // pred_check_branch
      %57 = sbr.rel (0) target = $region41
    $region40: #{recurrent_model_forward.1} parent=1 // pred_region
      %59 = dma.done [#allocation5], 1024
    $region41: #{recurrent_model_forward.1} parent=1 // pred_fallthru
      _
    // Predicated region
    $region42: #{recurrent_model_forward.1} parent=1 // pred_check
      _
    $region43: #{recurrent_model_forward.1} parent=1 // pred_check_branch
      %61 = sbr.rel (0) target = $region45
    $region44: #{recurrent_model_forward.1} parent=1 // pred_region
      %63 = dma.done [#allocation7], 2048
    $region45: #{recurrent_model_forward.1} parent=1 // pred_fallthru
      _
    %v64 = vld [vmem:[%s0] sm:$0xff]
    %v65 = vld [vmem:[%s0 + $0x8] sm:$0xff]
    %v66 = vld [vmem:[#allocation4] sm:$0xff]
    %v67 = vld [vmem:[#allocation4 + $0x8] sm:$0xff]
    %v68 = vld [vmem:[#allocation4 + $0x10] sm:$0xff]
    %v69 = vld [vmem:[#allocation4 + $0x18] sm:$0xff]
    %v70 = vld [vmem:[#allocation4 + $0x20] sm:$0xff]
    %v71 = vld [vmem:[#allocation4 + $0x28] sm:$0xff]
    %v72 = vld [vmem:[#allocation4 + $0x30] sm:$0xff]
    %v73 = vld [vmem:[#allocation4 + $0x38] sm:$0xff]
    %v74 = vld [vmem:[%s3] sm:$0x1]
    %v76 = vperm.slane %v74, 0
    %vm78 = vcmask 523264
    %v80 = vsel %vm78, %v64, 0
    %v83 = vsel %vm78, %v65, 0
    %85 = vmatpush.msra.mxu0 0.0
    %86 = vmatpush.msra.mxu0 0.0
    %87 = vmatpush.msra.mxu0 0.0
    %88 = vmatpush.msra.mxu0 0.0
    %89 = vmatpush.msra.mxu0 0.0
    %90 = vmatpush.msra.mxu0 0.0
    %91 = vmatpush.msra.mxu0 0.0
    %92 = vmatpush.msra.mxu0 0.0
    %93 = vmatpush.msra.mxu0 %v73
    %94 = vmatpush.msra.mxu0 %v72
    %95 = vmatpush.msra.mxu0 %v71
    %96 = vmatpush.msra.mxu0 %v70
    %97 = vmatpush.msra.mxu0 %v69
    %98 = vmatpush.msra.mxu0 %v68
    %99 = vmatpush.msra.mxu0 %v67
    %100 = vmatpush.msra.mxu0 %v66
    %101 = vmatmul.f32.gmra.mxu0 %v80
    %v102 = vpop.f32.mrf.mxu0
    %v103 = vadd.f32 %v76, %v102
    %104 = vmatmul.f32.gmra.mxu0 %v83
    %v105 = vpop.f32.mrf.mxu0
    %v106 = vadd.f32 %v76, %v105
    %107 = vdwg.mxu0
    %v108 = vld [vmem:[%s2] sm:$0xff]
    %v109 = vld [vmem:[%s2 + $0x8] sm:$0xff]
    %v110 = vld [vmem:[%s2 + $0x10] sm:$0xff]
    %v111 = vld [vmem:[%s2 + $0x18] sm:$0xff]
    %v112 = vld [vmem:[%s2 + $0x20] sm:$0xff]
    %v113 = vld [vmem:[%s2 + $0x28] sm:$0xff]
    %v114 = vld [vmem:[%s2 + $0x30] sm:$0xff]
    %v115 = vld [vmem:[%s2 + $0x38] sm:$0xff]
    %v116 = vld [vmem:[%s2 + $0x40] sm:$0xff]
    %v117 = vld [vmem:[%s2 + $0x48] sm:$0xff]
    %v118 = vld [vmem:[%s2 + $0x50] sm:$0xff]
    %v119 = vld [vmem:[%s2 + $0x58] sm:$0xff]
    %v120 = vld [vmem:[%s2 + $0x60] sm:$0xff]
    %v121 = vld [vmem:[%s2 + $0x68] sm:$0xff]
    %v122 = vld [vmem:[%s2 + $0x70] sm:$0xff]
    %v123 = vld [vmem:[%s2 + $0x78] sm:$0xff]
    %124 = vmatpush.msra.mxu0 %v123
    %125 = vmatpush.msra.mxu0 %v122
    %126 = vmatpush.msra.mxu0 %v121
    %127 = vmatpush.msra.mxu0 %v120
    %128 = vmatpush.msra.mxu0 %v119
    %129 = vmatpush.msra.mxu0 %v118
    %130 = vmatpush.msra.mxu0 %v117
    %131 = vmatpush.msra.mxu0 %v116
    %132 = vmatpush.msra.mxu0 %v115
    %133 = vmatpush.msra.mxu0 %v114
    %134 = vmatpush.msra.mxu0 %v113
    %135 = vmatpush.msra.mxu0 %v112
    %136 = vmatpush.msra.mxu0 %v111
    %137 = vmatpush.msra.mxu0 %v110
    %138 = vmatpush.msra.mxu0 %v109
    %139 = vmatpush.msra.mxu0 %v108
    %140 = vmatmul.f32.gmra.mxu0 0.0
    %v141 = vpop.f32.mrf.mxu0
    %v142 = vadd.f32 0.0, %v141
    %143 = vdwg.mxu0
    %v144 = vadd.f32 %v103, %v142
    %v145 = vxor.u32 %v144, 2147483648
    %v146 = vmul.f32 %v145, 1.442695
    %v147 = vpow.pop %v146
    %v148 = vadd.f32 %v147, 1.0
    %v149 = vrcp.pop %v148
    %v150 = vmul.f32 %v148, %v149
    %v151 = vsub.f32 1.0, %v150
    %v152 = vmul.f32 %v149, %v151
    %v153 = vadd.f32 %v149, %v152
    %vm154 = vweird.f32 %v148
    %vm155 = vweird.f32 %v149
    %vm156 = vmor %vm154, %vm155
    %v157 = vsel %vm156, %v149, %v153
    %v158 = vand.u32 2147483647, %v148
    %vm159 = vcmp.eq.f32.partialorder %v158, 8.507059e+37
    %v160 = vand.u32 %v148, 2147483648
    %v161 = vor.u32 1.1754944e-38, %v160
    %v162 = vsel %vm159, %v161, %v157
    %v163 = vmul.f32 1.0, %v162
    %v164 = vtanh.pop %v144
    %165 = vrot.lane.b32.xlu0 %v164, 64
    %v166 = vpop.permute.xlu0 %165
    %167 = vrot.lane.b32.xlu0 %v163, 96
    %v168 = vpop.permute.xlu0 %167
    %169 = vrot.lane.b32.xlu0 %v163, 32
    %v170 = vpop.permute.xlu0 %169
    %v171 = vmul.f32 %v168, 0.0
    %v172 = vmul.f32 %v163, %v166
    %v173 = vadd.f32 %v171, %v172
    %v174 = vtanh.pop %v173
    %v175 = vmul.f32 %v170, %v174
    %176 = vst [vmem:[#allocation2] sm:$0x3] %v175
    %177 = vmatpush.msra.mxu0 %v123
    %178 = vmatpush.msra.mxu0 %v122
    %179 = vmatpush.msra.mxu0 %v121
    %180 = vmatpush.msra.mxu0 %v120
    %181 = vmatpush.msra.mxu0 %v119
    %182 = vmatpush.msra.mxu0 %v118
    %183 = vmatpush.msra.mxu0 %v117
    %184 = vmatpush.msra.mxu0 %v116
    %185 = vmatpush.msra.mxu0 %v115
    %186 = vmatpush.msra.mxu0 %v114
    %187 = vmatpush.msra.mxu0 %v113
    %188 = vmatpush.msra.mxu0 %v112
    %189 = vmatpush.msra.mxu0 %v111
    %190 = vmatpush.msra.mxu0 %v110
    %191 = vmatpush.msra.mxu0 %v109
    %192 = vmatpush.msra.mxu0 %v108
    %193 = vmatmul.f32.gmra.mxu0 %v175
    %v194 = vpop.f32.mrf.mxu0
    %v195 = vadd.f32 0.0, %v194
    %196 = vdwg.mxu0
    %v198 = vrot.slane %v195, 6
    %v200 = vadd.f32 %v103, %v198
    %v201 = vxor.u32 %v200, 2147483648
    %v202 = vmul.f32 %v201, 1.442695
    %v203 = vpow.pop %v202
    %v204 = vadd.f32 %v203, 1.0
    %v205 = vrcp.pop %v204
    %v206 = vmul.f32 %v204, %v205
    %v207 = vsub.f32 1.0, %v206
    %v208 = vmul.f32 %v205, %v207
    %v209 = vadd.f32 %v205, %v208
    %vm210 = vweird.f32 %v204
    %vm211 = vweird.f32 %v205
    %vm212 = vmor %vm210, %vm211
    %v213 = vsel %vm212, %v205, %v209
    %v214 = vand.u32 2147483647, %v204
    %vm215 = vcmp.eq.f32.partialorder %v214, 8.507059e+37
    %v216 = vand.u32 %v204, 2147483648
    %v217 = vor.u32 1.1754944e-38, %v216
    %v218 = vsel %vm215, %v217, %v213
    %v219 = vmul.f32 1.0, %v218
    %v220 = vtanh.pop %v200
    %v222 = vrot.slane %v220, 2
    %224 = vrot.lane.b32.xlu0 %v222, 64
    %v225 = vpop.permute.xlu0 %224
    %v227 = vrot.slane %v219, 2
    %229 = vrot.lane.b32.xlu0 %v227, 96
    %v230 = vpop.permute.xlu0 %229
    %231 = vrot.lane.b32.xlu0 %v227, 32
    %v232 = vpop.permute.xlu0 %231
    %v233 = vmul.f32 %v230, %v173
    %v235 = vrot.slane %v225, 6
    %v237 = vmul.f32 %v219, %v235
    %v239 = vrot.slane %v237, 2
    %v241 = vadd.f32 %v233, %v239
    %v242 = vtanh.pop %v241
    %v243 = vmul.f32 %v232, %v242
    %244 = vst [vmem:[#allocation2 + $0x2] sm:$0x3] %v243
    %245 = vmatpush.msra.mxu0 %v123
    %246 = vmatpush.msra.mxu0 %v122
    %247 = vmatpush.msra.mxu0 %v121
    %248 = vmatpush.msra.mxu0 %v120
    %249 = vmatpush.msra.mxu0 %v119
    %250 = vmatpush.msra.mxu0 %v118
    %251 = vmatpush.msra.mxu0 %v117
    %252 = vmatpush.msra.mxu0 %v116
    %253 = vmatpush.msra.mxu0 %v115
    %254 = vmatpush.msra.mxu0 %v114
    %255 = vmatpush.msra.mxu0 %v113
    %256 = vmatpush.msra.mxu0 %v112
    %257 = vmatpush.msra.mxu0 %v111
    %258 = vmatpush.msra.mxu0 %v110
    %259 = vmatpush.msra.mxu0 %v109
    %260 = vmatpush.msra.mxu0 %v108
    %261 = vmatmul.f32.gmra.mxu0 %v243
    %v262 = vpop.f32.mrf.mxu0
    %v263 = vadd.f32 0.0, %v262
    %264 = vdwg.mxu0
    %v266 = vrot.slane %v263, 4
    %v268 = vadd.f32 %v103, %v266
    %v269 = vxor.u32 %v268, 2147483648
    %v270 = vmul.f32 %v269, 1.442695
    %v271 = vpow.pop %v270
    %v272 = vadd.f32 %v271, 1.0
    %v273 = vrcp.pop %v272
    %v274 = vmul.f32 %v272, %v273
    %v275 = vsub.f32 1.0, %v274
    %v276 = vmul.f32 %v273, %v275
    %v277 = vadd.f32 %v273, %v276
    %vm278 = vweird.f32 %v272
    %vm279 = vweird.f32 %v273
    %vm280 = vmor %vm278, %vm279
    %v281 = vsel %vm280, %v273, %v277
    %v282 = vand.u32 2147483647, %v272
    %vm283 = vcmp.eq.f32.partialorder %v282, 8.507059e+37
    %v284 = vand.u32 %v272, 2147483648
    %v285 = vor.u32 1.1754944e-38, %v284
    %v286 = vsel %vm283, %v285, %v281
    %v287 = vmul.f32 1.0, %v286
    %v288 = vtanh.pop %v268
    %v290 = vrot.slane %v288, 4
    %292 = vrot.lane.b32.xlu0 %v290, 64
    %v293 = vpop.permute.xlu0 %292
    %v295 = vrot.slane %v287, 4
    %297 = vrot.lane.b32.xlu0 %v295, 96
    %v298 = vpop.permute.xlu0 %297
    %299 = vrot.lane.b32.xlu0 %v295, 32
    %v300 = vpop.permute.xlu0 %299
    %v301 = vmul.f32 %v298, %v241
    %v303 = vrot.slane %v293, 4
    %v305 = vmul.f32 %v287, %v303
    %v307 = vrot.slane %v305, 4
    %v309 = vadd.f32 %v301, %v307
    %v310 = vtanh.pop %v309
    %v311 = vmul.f32 %v300, %v310
    %312 = vst [vmem:[#allocation2 + $0x4] sm:$0x3] %v311
    %313 = vmatpush.msra.mxu0 %v123
    %314 = vmatpush.msra.mxu0 %v122
    %315 = vmatpush.msra.mxu0 %v121
    %316 = vmatpush.msra.mxu0 %v120
    %317 = vmatpush.msra.mxu0 %v119
    %318 = vmatpush.msra.mxu0 %v118
    %319 = vmatpush.msra.mxu0 %v117
    %320 = vmatpush.msra.mxu0 %v116
    %321 = vmatpush.msra.mxu0 %v115
    %322 = vmatpush.msra.mxu0 %v114
    %323 = vmatpush.msra.mxu0 %v113
    %324 = vmatpush.msra.mxu0 %v112
    %325 = vmatpush.msra.mxu0 %v111
    %326 = vmatpush.msra.mxu0 %v110
    %327 = vmatpush.msra.mxu0 %v109
    %328 = vmatpush.msra.mxu0 %v108
    %329 = vmatmul.f32.gmra.mxu0 %v311
    %v330 = vpop.f32.mrf.mxu0
    %v331 = vadd.f32 0.0, %v330
    %332 = vdwg.mxu0
    %v334 = vrot.slane %v331, 2
    %v336 = vadd.f32 %v103, %v334
    %v337 = vxor.u32 %v336, 2147483648
    %v338 = vmul.f32 %v337, 1.442695
    %v339 = vpow.pop %v338
    %v340 = vadd.f32 %v339, 1.0
    %v341 = vrcp.pop %v340
    %v342 = vmul.f32 %v340, %v341
    %v343 = vsub.f32 1.0, %v342
    %v344 = vmul.f32 %v341, %v343
    %v345 = vadd.f32 %v341, %v344
    %vm346 = vweird.f32 %v340
    %vm347 = vweird.f32 %v341
    %vm348 = vmor %vm346, %vm347
    %v349 = vsel %vm348, %v341, %v345
    %v350 = vand.u32 2147483647, %v340
    %vm351 = vcmp.eq.f32.partialorder %v350, 8.507059e+37
    %v352 = vand.u32 %v340, 2147483648
    %v353 = vor.u32 1.1754944e-38, %v352
    %v354 = vsel %vm351, %v353, %v349
    %v355 = vmul.f32 1.0, %v354
    %v356 = vtanh.pop %v336
    %v358 = vrot.slane %v356, 6
    %360 = vrot.lane.b32.xlu0 %v358, 64
    %v361 = vpop.permute.xlu0 %360
    %v363 = vrot.slane %v355, 6
    %365 = vrot.lane.b32.xlu0 %v363, 96
    %v366 = vpop.permute.xlu0 %365
    %367 = vrot.lane.b32.xlu0 %v363, 32
    %v368 = vpop.permute.xlu0 %367
    %v369 = vmul.f32 %v366, %v309
    %v371 = vrot.slane %v361, 2
    %v373 = vmul.f32 %v355, %v371
    %v375 = vrot.slane %v373, 6
    %v377 = vadd.f32 %v369, %v375
    %v378 = vtanh.pop %v377
    %v379 = vmul.f32 %v368, %v378
    %380 = vst [vmem:[#allocation2 + $0x6] sm:$0x3] %v379
    %381 = vmatpush.msra.mxu0 %v123
    %382 = vmatpush.msra.mxu0 %v122
    %383 = vmatpush.msra.mxu0 %v121
    %384 = vmatpush.msra.mxu0 %v120
    %385 = vmatpush.msra.mxu0 %v119
    %386 = vmatpush.msra.mxu0 %v118
    %387 = vmatpush.msra.mxu0 %v117
    %388 = vmatpush.msra.mxu0 %v116
    %389 = vmatpush.msra.mxu0 %v115
    %390 = vmatpush.msra.mxu0 %v114
    %391 = vmatpush.msra.mxu0 %v113
    %392 = vmatpush.msra.mxu0 %v112
    %393 = vmatpush.msra.mxu0 %v111
    %394 = vmatpush.msra.mxu0 %v110
    %395 = vmatpush.msra.mxu0 %v109
    %396 = vmatpush.msra.mxu0 %v108
    %397 = vmatmul.f32.gmra.mxu0 %v379
    %v398 = vpop.f32.mrf.mxu0
    %v399 = vadd.f32 0.0, %v398
    %400 = vdwg.mxu0
    %v401 = vadd.f32 %v106, %v399
    %v402 = vxor.u32 %v401, 2147483648
    %v403 = vmul.f32 %v402, 1.442695
    %v404 = vpow.pop %v403
    %v405 = vadd.f32 %v404, 1.0
    %v406 = vrcp.pop %v405
    %v407 = vmul.f32 %v405, %v406
    %v408 = vsub.f32 1.0, %v407
    %v409 = vmul.f32 %v406, %v408
    %v410 = vadd.f32 %v406, %v409
    %vm411 = vweird.f32 %v405
    %vm412 = vweird.f32 %v406
    %vm413 = vmor %vm411, %vm412
    %v414 = vsel %vm413, %v406, %v410
    %v415 = vand.u32 2147483647, %v405
    %vm416 = vcmp.eq.f32.partialorder %v415, 8.507059e+37
    %v417 = vand.u32 %v405, 2147483648
    %v418 = vor.u32 1.1754944e-38, %v417
    %v419 = vsel %vm416, %v418, %v414
    %v420 = vmul.f32 1.0, %v419
    %v421 = vtanh.pop %v401
    %422 = vrot.lane.b32.xlu0 %v421, 64
    %v423 = vpop.permute.xlu0 %422
    %424 = vrot.lane.b32.xlu0 %v420, 96
    %v425 = vpop.permute.xlu0 %424
    %426 = vrot.lane.b32.xlu0 %v420, 32
    %v427 = vpop.permute.xlu0 %426
    %v428 = vmul.f32 %v425, %v377
    %v429 = vmul.f32 %v420, %v423
    %v430 = vadd.f32 %v428, %v429
    %v431 = vtanh.pop %v430
    %v432 = vmul.f32 %v427, %v431
    %433 = vst [vmem:[#allocation2 + $0x8] sm:$0x3] %v432
    %434 = vmatpush.msra.mxu0 %v123
    %435 = vmatpush.msra.mxu0 %v122
    %436 = vmatpush.msra.mxu0 %v121
    %437 = vmatpush.msra.mxu0 %v120
    %438 = vmatpush.msra.mxu0 %v119
    %439 = vmatpush.msra.mxu0 %v118
    %440 = vmatpush.msra.mxu0 %v117
    %441 = vmatpush.msra.mxu0 %v116
    %442 = vmatpush.msra.mxu0 %v115
    %443 = vmatpush.msra.mxu0 %v114
    %444 = vmatpush.msra.mxu0 %v113
    %445 = vmatpush.msra.mxu0 %v112
    %446 = vmatpush.msra.mxu0 %v111
    %447 = vmatpush.msra.mxu0 %v110
    %448 = vmatpush.msra.mxu0 %v109
    %449 = vmatpush.msra.mxu0 %v108
    %450 = vmatmul.f32.gmra.mxu0 %v432
    %v451 = vpop.f32.mrf.mxu0
    %v452 = vadd.f32 0.0, %v451
    %453 = vdwg.mxu0
    %v455 = vrot.slane %v452, 6
    %v457 = vadd.f32 %v106, %v455
    %v458 = vxor.u32 %v457, 2147483648
    %v459 = vmul.f32 %v458, 1.442695
    %v460 = vpow.pop %v459
    %v461 = vadd.f32 %v460, 1.0
    %v462 = vrcp.pop %v461
    %v463 = vmul.f32 %v461, %v462
    %v464 = vsub.f32 1.0, %v463
    %v465 = vmul.f32 %v462, %v464
    %v466 = vadd.f32 %v462, %v465
    %vm467 = vweird.f32 %v461
    %vm468 = vweird.f32 %v462
    %vm469 = vmor %vm467, %vm468
    %v470 = vsel %vm469, %v462, %v466
    %v471 = vand.u32 2147483647, %v461
    %vm472 = vcmp.eq.f32.partialorder %v471, 8.507059e+37
    %v473 = vand.u32 %v461, 2147483648
    %v474 = vor.u32 1.1754944e-38, %v473
    %v475 = vsel %vm472, %v474, %v470
    %v476 = vmul.f32 1.0, %v475
    %v477 = vtanh.pop %v457
    %v479 = vrot.slane %v477, 2
    %481 = vrot.lane.b32.xlu0 %v479, 64
    %v482 = vpop.permute.xlu0 %481
    %v484 = vrot.slane %v476, 2
    %486 = vrot.lane.b32.xlu0 %v484, 96
    %v487 = vpop.permute.xlu0 %486
    %488 = vrot.lane.b32.xlu0 %v484, 32
    %v489 = vpop.permute.xlu0 %488
    %v490 = vmul.f32 %v487, %v430
    %v492 = vrot.slane %v482, 6
    %v494 = vmul.f32 %v476, %v492
    %v496 = vrot.slane %v494, 2
    %v498 = vadd.f32 %v490, %v496
    %v499 = vtanh.pop %v498
    %v500 = vmul.f32 %v489, %v499
    %501 = vst [vmem:[#allocation2 + $0xa] sm:$0x3] %v500
    %502 = vmatpush.msra.mxu0 %v123
    %503 = vmatpush.msra.mxu0 %v122
    %504 = vmatpush.msra.mxu0 %v121
    %505 = vmatpush.msra.mxu0 %v120
    %506 = vmatpush.msra.mxu0 %v119
    %507 = vmatpush.msra.mxu0 %v118
    %508 = vmatpush.msra.mxu0 %v117
    %509 = vmatpush.msra.mxu0 %v116
    %510 = vmatpush.msra.mxu0 %v115
    %511 = vmatpush.msra.mxu0 %v114
    %512 = vmatpush.msra.mxu0 %v113
    %513 = vmatpush.msra.mxu0 %v112
    %514 = vmatpush.msra.mxu0 %v111
    %515 = vmatpush.msra.mxu0 %v110
    %516 = vmatpush.msra.mxu0 %v109
    %517 = vmatpush.msra.mxu0 %v108
    %518 = vmatmul.f32.gmra.mxu0 %v500
    %v519 = vpop.f32.mrf.mxu0
    %v520 = vadd.f32 0.0, %v519
    %521 = vdwg.mxu0
    %v523 = vrot.slane %v520, 4
    %v525 = vadd.f32 %v106, %v523
    %v526 = vxor.u32 %v525, 2147483648
    %v527 = vmul.f32 %v526, 1.442695
    %v528 = vpow.pop %v527
    %v529 = vadd.f32 %v528, 1.0
    %v530 = vrcp.pop %v529
    %v531 = vmul.f32 %v529, %v530
    %v532 = vsub.f32 1.0, %v531
    %v533 = vmul.f32 %v530, %v532
    %v534 = vadd.f32 %v530, %v533
    %vm535 = vweird.f32 %v529
    %vm536 = vweird.f32 %v530
    %vm537 = vmor %vm535, %vm536
    %v538 = vsel %vm537, %v530, %v534
    %v539 = vand.u32 2147483647, %v529
    %vm540 = vcmp.eq.f32.partialorder %v539, 8.507059e+37
    %v541 = vand.u32 %v529, 2147483648
    %v542 = vor.u32 1.1754944e-38, %v541
    %v543 = vsel %vm540, %v542, %v538
    %v544 = vmul.f32 1.0, %v543
    %v545 = vtanh.pop %v525
    %v547 = vrot.slane %v545, 4
    %549 = vrot.lane.b32.xlu0 %v547, 64
    %v550 = vpop.permute.xlu0 %549
    %v552 = vrot.slane %v544, 4
    %554 = vrot.lane.b32.xlu0 %v552, 96
    %v555 = vpop.permute.xlu0 %554
    %556 = vrot.lane.b32.xlu0 %v552, 32
    %v557 = vpop.permute.xlu0 %556
    %v558 = vmul.f32 %v555, %v498
    %v560 = vrot.slane %v550, 4
    %v562 = vmul.f32 %v544, %v560
    %v564 = vrot.slane %v562, 4
    %v566 = vadd.f32 %v558, %v564
    %v567 = vtanh.pop %v566
    %v568 = vmul.f32 %v557, %v567
    %569 = vst [vmem:[#allocation2 + $0xc] sm:$0x3] %v568
    %570 = vmatpush.msra.mxu0 %v123
    %571 = vmatpush.msra.mxu0 %v122
    %572 = vmatpush.msra.mxu0 %v121
    %573 = vmatpush.msra.mxu0 %v120
    %574 = vmatpush.msra.mxu0 %v119
    %575 = vmatpush.msra.mxu0 %v118
    %576 = vmatpush.msra.mxu0 %v117
    %577 = vmatpush.msra.mxu0 %v116
    %578 = vmatpush.msra.mxu0 %v115
    %579 = vmatpush.msra.mxu0 %v114
    %580 = vmatpush.msra.mxu0 %v113
    %581 = vmatpush.msra.mxu0 %v112
    %582 = vmatpush.msra.mxu0 %v111
    %583 = vmatpush.msra.mxu0 %v110
    %584 = vmatpush.msra.mxu0 %v109
    %585 = vmatpush.msra.mxu0 %v108
    %586 = vmatmul.f32.gmra.mxu0 %v568
    %v587 = vpop.f32.mrf.mxu0
    %v588 = vadd.f32 0.0, %v587
    %589 = vdwg.mxu0
    %v591 = vrot.slane %v588, 2
    %v593 = vadd.f32 %v106, %v591
    %v594 = vxor.u32 %v593, 2147483648
    %v595 = vmul.f32 %v594, 1.442695
    %v596 = vpow.pop %v595
    %v597 = vadd.f32 %v596, 1.0
    %v598 = vrcp.pop %v597
    %v599 = vmul.f32 %v597, %v598
    %v600 = vsub.f32 1.0, %v599
    %v601 = vmul.f32 %v598, %v600
    %v602 = vadd.f32 %v598, %v601
    %vm603 = vweird.f32 %v597
    %vm604 = vweird.f32 %v598
    %vm605 = vmor %vm603, %vm604
    %v606 = vsel %vm605, %v598, %v602
    %v607 = vand.u32 2147483647, %v597
    %vm608 = vcmp.eq.f32.partialorder %v607, 8.507059e+37
    %v609 = vand.u32 %v597, 2147483648
    %v610 = vor.u32 1.1754944e-38, %v609
    %v611 = vsel %vm608, %v610, %v606
    %v612 = vmul.f32 1.0, %v611
    %v613 = vtanh.pop %v593
    %v615 = vrot.slane %v613, 6
    %617 = vrot.lane.b32.xlu0 %v615, 64
    %v618 = vpop.permute.xlu0 %617
    %v620 = vrot.slane %v612, 6
    %622 = vrot.lane.b32.xlu0 %v620, 96
    %v623 = vpop.permute.xlu0 %622
    %624 = vrot.lane.b32.xlu0 %v620, 32
    %v625 = vpop.permute.xlu0 %624
    %v626 = vmul.f32 %v623, %v566
    %v628 = vrot.slane %v618, 2
    %v630 = vmul.f32 %v612, %v628
    %v632 = vrot.slane %v630, 6
    %v634 = vadd.f32 %v626, %v632
    %v635 = vtanh.pop %v634
    %v636 = vmul.f32 %v625, %v635
    %637 = vst [vmem:[#allocation2 + $0xe] sm:$0x3] %v636
    %v638 = vld [vmem:[#allocation2] sm:$0xff]
    %v639 = vld [vmem:[#allocation2 + $0x8] sm:$0xff]
    %v640 = vld [vmem:[%s4] sm:$0xff]
    %v641 = vld [vmem:[%s4 + $0x8] sm:$0xff]
    %v642 = vld [vmem:[%s4 + $0x10] sm:$0xff]
    %v643 = vld [vmem:[%s4 + $0x18] sm:$0xff]
    %v644 = vld [vmem:[%s4 + $0x20] sm:$0xff]
    %v645 = vld [vmem:[%s4 + $0x28] sm:$0xff]
    %v646 = vld [vmem:[%s4 + $0x30] sm:$0xff]
    %v647 = vld [vmem:[%s4 + $0x38] sm:$0xff]
    %v648 = vld [vmem:[%s4 + $0x40] sm:$0xff]
    %v649 = vld [vmem:[%s4 + $0x48] sm:$0xff]
    %v650 = vld [vmem:[%s4 + $0x50] sm:$0xff]
    %v651 = vld [vmem:[%s4 + $0x58] sm:$0xff]
    %v652 = vld [vmem:[%s4 + $0x60] sm:$0xff]
    %v653 = vld [vmem:[%s4 + $0x68] sm:$0xff]
    %v654 = vld [vmem:[%s4 + $0x70] sm:$0xff]
    %v655 = vld [vmem:[%s4 + $0x78] sm:$0xff]
    %v656 = vld [vmem:[%s6] sm:$0x1]
    %v658 = vperm.slane %v656, 0
    %660 = vmatpush.msra.mxu0 %v655
    %661 = vmatpush.msra.mxu0 %v654
    %662 = vmatpush.msra.mxu0 %v653
    %663 = vmatpush.msra.mxu0 %v652
    %664 = vmatpush.msra.mxu0 %v651
    %665 = vmatpush.msra.mxu0 %v650
    %666 = vmatpush.msra.mxu0 %v649
    %667 = vmatpush.msra.mxu0 %v648
    %668 = vmatpush.msra.mxu0 %v647
    %669 = vmatpush.msra.mxu0 %v646
    %670 = vmatpush.msra.mxu0 %v645
    %671 = vmatpush.msra.mxu0 %v644
    %672 = vmatpush.msra.mxu0 %v643
    %673 = vmatpush.msra.mxu0 %v642
    %674 = vmatpush.msra.mxu0 %v641
    %675 = vmatpush.msra.mxu0 %v640
    %676 = vmatmul.f32.gmra.mxu0 %v638
    %v677 = vpop.f32.mrf.mxu0
    %v678 = vadd.f32 %v658, %v677
    %679 = vmatmul.f32.gmra.mxu0 %v639
    %v680 = vpop.f32.mrf.mxu0
    %v681 = vadd.f32 %v658, %v680
    %682 = vdwg.mxu0
    %v683 = vld [vmem:[#allocation6] sm:$0xff]
    %v684 = vld [vmem:[#allocation6 + $0x8] sm:$0xff]
    %v685 = vld [vmem:[#allocation6 + $0x10] sm:$0xff]
    %v686 = vld [vmem:[#allocation6 + $0x18] sm:$0xff]
    %v687 = vld [vmem:[#allocation6 + $0x20] sm:$0xff]
    %v688 = vld [vmem:[#allocation6 + $0x28] sm:$0xff]
    %v689 = vld [vmem:[#allocation6 + $0x30] sm:$0xff]
    %v690 = vld [vmem:[#allocation6 + $0x38] sm:$0xff]
    %v691 = vld [vmem:[#allocation6 + $0x40] sm:$0xff]
    %v692 = vld [vmem:[#allocation6 + $0x48] sm:$0xff]
    %v693 = vld [vmem:[#allocation6 + $0x50] sm:$0xff]
    %v694 = vld [vmem:[#allocation6 + $0x58] sm:$0xff]
    %v695 = vld [vmem:[#allocation6 + $0x60] sm:$0xff]
    %v696 = vld [vmem:[#allocation6 + $0x68] sm:$0xff]
    %v697 = vld [vmem:[#allocation6 + $0x70] sm:$0xff]
    %v698 = vld [vmem:[#allocation6 + $0x78] sm:$0xff]
    %699 = vmatpush.msra.mxu0 %v698
    %700 = vmatpush.msra.mxu0 %v697
    %701 = vmatpush.msra.mxu0 %v696
    %702 = vmatpush.msra.mxu0 %v695
    %703 = vmatpush.msra.mxu0 %v694
    %704 = vmatpush.msra.mxu0 %v693
    %705 = vmatpush.msra.mxu0 %v692
    %706 = vmatpush.msra.mxu0 %v691
    %707 = vmatpush.msra.mxu0 %v690
    %708 = vmatpush.msra.mxu0 %v689
    %709 = vmatpush.msra.mxu0 %v688
    %710 = vmatpush.msra.mxu0 %v687
    %711 = vmatpush.msra.mxu0 %v686
    %712 = vmatpush.msra.mxu0 %v685
    %713 = vmatpush.msra.mxu0 %v684
    %714 = vmatpush.msra.mxu0 %v683
    %715 = vmatmul.f32.gmra.mxu0 0.0
    %v716 = vpop.f32.mrf.mxu0
    %v717 = vadd.f32 0.0, %v716
    %718 = vdwg.mxu0
    %v719 = vadd.f32 %v678, %v717
    %v720 = vxor.u32 %v719, 2147483648
    %v721 = vmul.f32 %v720, 1.442695
    %v722 = vpow.pop %v721
    %v723 = vadd.f32 %v722, 1.0
    %v724 = vrcp.pop %v723
    %v725 = vmul.f32 %v723, %v724
    %v726 = vsub.f32 1.0, %v725
    %v727 = vmul.f32 %v724, %v726
    %v728 = vadd.f32 %v724, %v727
    %vm729 = vweird.f32 %v723
    %vm730 = vweird.f32 %v724
    %vm731 = vmor %vm729, %vm730
    %v732 = vsel %vm731, %v724, %v728
    %v733 = vand.u32 2147483647, %v723
    %vm734 = vcmp.eq.f32.partialorder %v733, 8.507059e+37
    %v735 = vand.u32 %v723, 2147483648
    %v736 = vor.u32 1.1754944e-38, %v735
    %v737 = vsel %vm734, %v736, %v732
    %v738 = vmul.f32 1.0, %v737
    %v739 = vtanh.pop %v719
    %740 = vrot.lane.b32.xlu0 %v739, 64
    %v741 = vpop.permute.xlu0 %740
    %742 = vrot.lane.b32.xlu0 %v738, 96
    %v743 = vpop.permute.xlu0 %742
    %744 = vrot.lane.b32.xlu0 %v738, 32
    %v745 = vpop.permute.xlu0 %744
    %v746 = vmul.f32 %v743, 0.0
    %v747 = vmul.f32 %v738, %v741
    %v748 = vadd.f32 %v746, %v747
    %v749 = vtanh.pop %v748
    %v750 = vmul.f32 %v745, %v749
    %751 = vst [vmem:[#allocation3] sm:$0x3] %v750
    %752 = vmatpush.msra.mxu0 %v698
    %753 = vmatpush.msra.mxu0 %v697
    %754 = vmatpush.msra.mxu0 %v696
    %755 = vmatpush.msra.mxu0 %v695
    %756 = vmatpush.msra.mxu0 %v694
    %757 = vmatpush.msra.mxu0 %v693
    %758 = vmatpush.msra.mxu0 %v692
    %759 = vmatpush.msra.mxu0 %v691
    %760 = vmatpush.msra.mxu0 %v690
    %761 = vmatpush.msra.mxu0 %v689
    %762 = vmatpush.msra.mxu0 %v688
    %763 = vmatpush.msra.mxu0 %v687
    %764 = vmatpush.msra.mxu0 %v686
    %765 = vmatpush.msra.mxu0 %v685
    %766 = vmatpush.msra.mxu0 %v684
    %767 = vmatpush.msra.mxu0 %v683
    %768 = vmatmul.f32.gmra.mxu0 %v750
    %v769 = vpop.f32.mrf.mxu0
    %v770 = vadd.f32 0.0, %v769
    %771 = vdwg.mxu0
    %v773 = vrot.slane %v770, 6
    %v775 = vadd.f32 %v678, %v773
    %v776 = vxor.u32 %v775, 2147483648
    %v777 = vmul.f32 %v776, 1.442695
    %v778 = vpow.pop %v777
    %v779 = vadd.f32 %v778, 1.0
    %v780 = vrcp.pop %v779
    %v781 = vmul.f32 %v779, %v780
    %v782 = vsub.f32 1.0, %v781
    %v783 = vmul.f32 %v780, %v782
    %v784 = vadd.f32 %v780, %v783
    %vm785 = vweird.f32 %v779
    %vm786 = vweird.f32 %v780
    %vm787 = vmor %vm785, %vm786
    %v788 = vsel %vm787, %v780, %v784
    %v789 = vand.u32 2147483647, %v779
    %vm790 = vcmp.eq.f32.partialorder %v789, 8.507059e+37
    %v791 = vand.u32 %v779, 2147483648
    %v792 = vor.u32 1.1754944e-38, %v791
    %v793 = vsel %vm790, %v792, %v788
    %v794 = vmul.f32 1.0, %v793
    %v795 = vtanh.pop %v775
    %v797 = vrot.slane %v795, 2
    %799 = vrot.lane.b32.xlu0 %v797, 64
    %v800 = vpop.permute.xlu0 %799
    %v802 = vrot.slane %v794, 2
    %804 = vrot.lane.b32.xlu0 %v802, 96
    %v805 = vpop.permute.xlu0 %804
    %806 = vrot.lane.b32.xlu0 %v802, 32
    %v807 = vpop.permute.xlu0 %806
    %v808 = vmul.f32 %v805, %v748
    %v810 = vrot.slane %v800, 6
    %v812 = vmul.f32 %v794, %v810
    %v814 = vrot.slane %v812, 2
    %v816 = vadd.f32 %v808, %v814
    %v817 = vtanh.pop %v816
    %v818 = vmul.f32 %v807, %v817
    %819 = vst [vmem:[#allocation3 + $0x2] sm:$0x3] %v818
    %820 = vmatpush.msra.mxu0 %v698
    %821 = vmatpush.msra.mxu0 %v697
    %822 = vmatpush.msra.mxu0 %v696
    %823 = vmatpush.msra.mxu0 %v695
    %824 = vmatpush.msra.mxu0 %v694
    %825 = vmatpush.msra.mxu0 %v693
    %826 = vmatpush.msra.mxu0 %v692
    %827 = vmatpush.msra.mxu0 %v691
    %828 = vmatpush.msra.mxu0 %v690
    %829 = vmatpush.msra.mxu0 %v689
    %830 = vmatpush.msra.mxu0 %v688
    %831 = vmatpush.msra.mxu0 %v687
    %832 = vmatpush.msra.mxu0 %v686
    %833 = vmatpush.msra.mxu0 %v685
    %834 = vmatpush.msra.mxu0 %v684
    %835 = vmatpush.msra.mxu0 %v683
    %836 = vmatmul.f32.gmra.mxu0 %v818
    %v837 = vpop.f32.mrf.mxu0
    %v838 = vadd.f32 0.0, %v837
    %839 = vdwg.mxu0
    %v841 = vrot.slane %v838, 4
    %v843 = vadd.f32 %v678, %v841
    %v844 = vxor.u32 %v843, 2147483648
    %v845 = vmul.f32 %v844, 1.442695
    %v846 = vpow.pop %v845
    %v847 = vadd.f32 %v846, 1.0
    %v848 = vrcp.pop %v847
    %v849 = vmul.f32 %v847, %v848
    %v850 = vsub.f32 1.0, %v849
    %v851 = vmul.f32 %v848, %v850
    %v852 = vadd.f32 %v848, %v851
    %vm853 = vweird.f32 %v847
    %vm854 = vweird.f32 %v848
    %vm855 = vmor %vm853, %vm854
    %v856 = vsel %vm855, %v848, %v852
    %v857 = vand.u32 2147483647, %v847
    %vm858 = vcmp.eq.f32.partialorder %v857, 8.507059e+37
    %v859 = vand.u32 %v847, 2147483648
    %v860 = vor.u32 1.1754944e-38, %v859
    %v861 = vsel %vm858, %v860, %v856
    %v862 = vmul.f32 1.0, %v861
    %v863 = vtanh.pop %v843
    %v865 = vrot.slane %v863, 4
    %867 = vrot.lane.b32.xlu0 %v865, 64
    %v868 = vpop.permute.xlu0 %867
    %v870 = vrot.slane %v862, 4
    %872 = vrot.lane.b32.xlu0 %v870, 96
    %v873 = vpop.permute.xlu0 %872
    %874 = vrot.lane.b32.xlu0 %v870, 32
    %v875 = vpop.permute.xlu0 %874
    %v876 = vmul.f32 %v873, %v816
    %v878 = vrot.slane %v868, 4
    %v880 = vmul.f32 %v862, %v878
    %v882 = vrot.slane %v880, 4
    %v884 = vadd.f32 %v876, %v882
    %v885 = vtanh.pop %v884
    %v886 = vmul.f32 %v875, %v885
    %887 = vst [vmem:[#allocation3 + $0x4] sm:$0x3] %v886
    %888 = vmatpush.msra.mxu0 %v698
    %889 = vmatpush.msra.mxu0 %v697
    %890 = vmatpush.msra.mxu0 %v696
    %891 = vmatpush.msra.mxu0 %v695
    %892 = vmatpush.msra.mxu0 %v694
    %893 = vmatpush.msra.mxu0 %v693
    %894 = vmatpush.msra.mxu0 %v692
    %895 = vmatpush.msra.mxu0 %v691
    %896 = vmatpush.msra.mxu0 %v690
    %897 = vmatpush.msra.mxu0 %v689
    %898 = vmatpush.msra.mxu0 %v688
    %899 = vmatpush.msra.mxu0 %v687
    %900 = vmatpush.msra.mxu0 %v686
    %901 = vmatpush.msra.mxu0 %v685
    %902 = vmatpush.msra.mxu0 %v684
    %903 = vmatpush.msra.mxu0 %v683
    %904 = vmatmul.f32.gmra.mxu0 %v886
    %v905 = vpop.f32.mrf.mxu0
    %v906 = vadd.f32 0.0, %v905
    %907 = vdwg.mxu0
    %v909 = vrot.slane %v906, 2
    %v911 = vadd.f32 %v678, %v909
    %v912 = vxor.u32 %v911, 2147483648
    %v913 = vmul.f32 %v912, 1.442695
    %v914 = vpow.pop %v913
    %v915 = vadd.f32 %v914, 1.0
    %v916 = vrcp.pop %v915
    %v917 = vmul.f32 %v915, %v916
    %v918 = vsub.f32 1.0, %v917
    %v919 = vmul.f32 %v916, %v918
    %v920 = vadd.f32 %v916, %v919
    %vm921 = vweird.f32 %v915
    %vm922 = vweird.f32 %v916
    %vm923 = vmor %vm921, %vm922
    %v924 = vsel %vm923, %v916, %v920
    %v925 = vand.u32 2147483647, %v915
    %vm926 = vcmp.eq.f32.partialorder %v925, 8.507059e+37
    %v927 = vand.u32 %v915, 2147483648
    %v928 = vor.u32 1.1754944e-38, %v927
    %v929 = vsel %vm926, %v928, %v924
    %v930 = vmul.f32 1.0, %v929
    %v931 = vtanh.pop %v911
    %v933 = vrot.slane %v931, 6
    %935 = vrot.lane.b32.xlu0 %v933, 64
    %v936 = vpop.permute.xlu0 %935
    %v938 = vrot.slane %v930, 6
    %940 = vrot.lane.b32.xlu0 %v938, 96
    %v941 = vpop.permute.xlu0 %940
    %942 = vrot.lane.b32.xlu0 %v938, 32
    %v943 = vpop.permute.xlu0 %942
    %v944 = vmul.f32 %v941, %v884
    %v946 = vrot.slane %v936, 2
    %v948 = vmul.f32 %v930, %v946
    %v950 = vrot.slane %v948, 6
    %v952 = vadd.f32 %v944, %v950
    %v953 = vtanh.pop %v952
    %v954 = vmul.f32 %v943, %v953
    %955 = vst [vmem:[#allocation3 + $0x6] sm:$0x3] %v954
    %956 = vmatpush.msra.mxu0 %v698
    %957 = vmatpush.msra.mxu0 %v697
    %958 = vmatpush.msra.mxu0 %v696
    %959 = vmatpush.msra.mxu0 %v695
    %960 = vmatpush.msra.mxu0 %v694
    %961 = vmatpush.msra.mxu0 %v693
    %962 = vmatpush.msra.mxu0 %v692
    %963 = vmatpush.msra.mxu0 %v691
    %964 = vmatpush.msra.mxu0 %v690
    %965 = vmatpush.msra.mxu0 %v689
    %966 = vmatpush.msra.mxu0 %v688
    %967 = vmatpush.msra.mxu0 %v687
    %968 = vmatpush.msra.mxu0 %v686
    %969 = vmatpush.msra.mxu0 %v685
    %970 = vmatpush.msra.mxu0 %v684
    %971 = vmatpush.msra.mxu0 %v683
    %972 = vmatmul.f32.gmra.mxu0 %v954
    %v973 = vpop.f32.mrf.mxu0
    %v974 = vadd.f32 0.0, %v973
    %975 = vdwg.mxu0
    %v976 = vadd.f32 %v681, %v974
    %v977 = vxor.u32 %v976, 2147483648
    %v978 = vmul.f32 %v977, 1.442695
    %v979 = vpow.pop %v978
    %v980 = vadd.f32 %v979, 1.0
    %v981 = vrcp.pop %v980
    %v982 = vmul.f32 %v980, %v981
    %v983 = vsub.f32 1.0, %v982
    %v984 = vmul.f32 %v981, %v983
    %v985 = vadd.f32 %v981, %v984
    %vm986 = vweird.f32 %v980
    %vm987 = vweird.f32 %v981
    %vm988 = vmor %vm986, %vm987
    %v989 = vsel %vm988, %v981, %v985
    %v990 = vand.u32 2147483647, %v980
    %vm991 = vcmp.eq.f32.partialorder %v990, 8.507059e+37
    %v992 = vand.u32 %v980, 2147483648
    %v993 = vor.u32 1.1754944e-38, %v992
    %v994 = vsel %vm991, %v993, %v989
    %v995 = vmul.f32 1.0, %v994
    %v996 = vtanh.pop %v976
    %997 = vrot.lane.b32.xlu0 %v996, 64
    %v998 = vpop.permute.xlu0 %997
    %999 = vrot.lane.b32.xlu0 %v995, 96
    %v1000 = vpop.permute.xlu0 %999
    %1001 = vrot.lane.b32.xlu0 %v995, 32
    %v1002 = vpop.permute.xlu0 %1001
    %v1003 = vmul.f32 %v1000, %v952
    %v1004 = vmul.f32 %v995, %v998
    %v1005 = vadd.f32 %v1003, %v1004
    %v1006 = vtanh.pop %v1005
    %v1007 = vmul.f32 %v1002, %v1006
    %1008 = vst [vmem:[#allocation3 + $0x8] sm:$0x3] %v1007
    %1009 = vmatpush.msra.mxu0 %v698
    %1010 = vmatpush.msra.mxu0 %v697
    %1011 = vmatpush.msra.mxu0 %v696
    %1012 = vmatpush.msra.mxu0 %v695
    %1013 = vmatpush.msra.mxu0 %v694
    %1014 = vmatpush.msra.mxu0 %v693
    %1015 = vmatpush.msra.mxu0 %v692
    %1016 = vmatpush.msra.mxu0 %v691
    %1017 = vmatpush.msra.mxu0 %v690
    %1018 = vmatpush.msra.mxu0 %v689
    %1019 = vmatpush.msra.mxu0 %v688
    %1020 = vmatpush.msra.mxu0 %v687
    %1021 = vmatpush.msra.mxu0 %v686
    %1022 = vmatpush.msra.mxu0 %v685
    %1023 = vmatpush.msra.mxu0 %v684
    %1024 = vmatpush.msra.mxu0 %v683
    %1025 = vmatmul.f32.gmra.mxu0 %v1007
    %v1026 = vpop.f32.mrf.mxu0
    %v1027 = vadd.f32 0.0, %v1026
    %1028 = vdwg.mxu0
    %v1030 = vrot.slane %v1027, 6
    %v1032 = vadd.f32 %v681, %v1030
    %v1033 = vxor.u32 %v1032, 2147483648
    %v1034 = vmul.f32 %v1033, 1.442695
    %v1035 = vpow.pop %v1034
    %v1036 = vadd.f32 %v1035, 1.0
    %v1037 = vrcp.pop %v1036
    %v1038 = vmul.f32 %v1036, %v1037
    %v1039 = vsub.f32 1.0, %v1038
    %v1040 = vmul.f32 %v1037, %v1039
    %v1041 = vadd.f32 %v1037, %v1040
    %vm1042 = vweird.f32 %v1036
    %vm1043 = vweird.f32 %v1037
    %vm1044 = vmor %vm1042, %vm1043
    %v1045 = vsel %vm1044, %v1037, %v1041
    %v1046 = vand.u32 2147483647, %v1036
    %vm1047 = vcmp.eq.f32.partialorder %v1046, 8.507059e+37
    %v1048 = vand.u32 %v1036, 2147483648
    %v1049 = vor.u32 1.1754944e-38, %v1048
    %v1050 = vsel %vm1047, %v1049, %v1045
    %v1051 = vmul.f32 1.0, %v1050
    %v1052 = vtanh.pop %v1032
    %v1054 = vrot.slane %v1052, 2
    %1056 = vrot.lane.b32.xlu0 %v1054, 64
    %v1057 = vpop.permute.xlu0 %1056
    %v1059 = vrot.slane %v1051, 2
    %1061 = vrot.lane.b32.xlu0 %v1059, 96
    %v1062 = vpop.permute.xlu0 %1061
    %1063 = vrot.lane.b32.xlu0 %v1059, 32
    %v1064 = vpop.permute.xlu0 %1063
    %v1065 = vmul.f32 %v1062, %v1005
    %v1067 = vrot.slane %v1057, 6
    %v1069 = vmul.f32 %v1051, %v1067
    %v1071 = vrot.slane %v1069, 2
    %v1073 = vadd.f32 %v1065, %v1071
    %v1074 = vtanh.pop %v1073
    %v1075 = vmul.f32 %v1064, %v1074
    %1076 = vst [vmem:[#allocation3 + $0xa] sm:$0x3] %v1075
    %1077 = vmatpush.msra.mxu0 %v698
    %1078 = vmatpush.msra.mxu0 %v697
    %1079 = vmatpush.msra.mxu0 %v696
    %1080 = vmatpush.msra.mxu0 %v695
    %1081 = vmatpush.msra.mxu0 %v694
    %1082 = vmatpush.msra.mxu0 %v693
    %1083 = vmatpush.msra.mxu0 %v692
    %1084 = vmatpush.msra.mxu0 %v691
    %1085 = vmatpush.msra.mxu0 %v690
    %1086 = vmatpush.msra.mxu0 %v689
    %1087 = vmatpush.msra.mxu0 %v688
    %1088 = vmatpush.msra.mxu0 %v687
    %1089 = vmatpush.msra.mxu0 %v686
    %1090 = vmatpush.msra.mxu0 %v685
    %1091 = vmatpush.msra.mxu0 %v684
    %1092 = vmatpush.msra.mxu0 %v683
    %1093 = vmatmul.f32.gmra.mxu0 %v1075
    %v1094 = vpop.f32.mrf.mxu0
    %v1095 = vadd.f32 0.0, %v1094
    %1096 = vdwg.mxu0
    %v1098 = vrot.slane %v1095, 4
    %v1100 = vadd.f32 %v681, %v1098
    %v1101 = vxor.u32 %v1100, 2147483648
    %v1102 = vmul.f32 %v1101, 1.442695
    %v1103 = vpow.pop %v1102
    %v1104 = vadd.f32 %v1103, 1.0
    %v1105 = vrcp.pop %v1104
    %v1106 = vmul.f32 %v1104, %v1105
    %v1107 = vsub.f32 1.0, %v1106
    %v1108 = vmul.f32 %v1105, %v1107
    %v1109 = vadd.f32 %v1105, %v1108
    %vm1110 = vweird.f32 %v1104
    %vm1111 = vweird.f32 %v1105
    %vm1112 = vmor %vm1110, %vm1111
    %v1113 = vsel %vm1112, %v1105, %v1109
    %v1114 = vand.u32 2147483647, %v1104
    %vm1115 = vcmp.eq.f32.partialorder %v1114, 8.507059e+37
    %v1116 = vand.u32 %v1104, 2147483648
    %v1117 = vor.u32 1.1754944e-38, %v1116
    %v1118 = vsel %vm1115, %v1117, %v1113
    %v1119 = vmul.f32 1.0, %v1118
    %v1120 = vtanh.pop %v1100
    %v1122 = vrot.slane %v1120, 4
    %1124 = vrot.lane.b32.xlu0 %v1122, 64
    %v1125 = vpop.permute.xlu0 %1124
    %v1127 = vrot.slane %v1119, 4
    %1129 = vrot.lane.b32.xlu0 %v1127, 96
    %v1130 = vpop.permute.xlu0 %1129
    %1131 = vrot.lane.b32.xlu0 %v1127, 32
    %v1132 = vpop.permute.xlu0 %1131
    %v1133 = vmul.f32 %v1130, %v1073
    %v1135 = vrot.slane %v1125, 4
    %v1137 = vmul.f32 %v1119, %v1135
    %v1139 = vrot.slane %v1137, 4
    %v1141 = vadd.f32 %v1133, %v1139
    %v1142 = vtanh.pop %v1141
    %v1143 = vmul.f32 %v1132, %v1142
    %1144 = vst [vmem:[#allocation3 + $0xc] sm:$0x3] %v1143
    %1145 = vmatpush.msra.mxu0 %v698
    %1146 = vmatpush.msra.mxu0 %v697
    %1147 = vmatpush.msra.mxu0 %v696
    %1148 = vmatpush.msra.mxu0 %v695
    %1149 = vmatpush.msra.mxu0 %v694
    %1150 = vmatpush.msra.mxu0 %v693
    %1151 = vmatpush.msra.mxu0 %v692
    %1152 = vmatpush.msra.mxu0 %v691
    %1153 = vmatpush.msra.mxu0 %v690
    %1154 = vmatpush.msra.mxu0 %v689
    %1155 = vmatpush.msra.mxu0 %v688
    %1156 = vmatpush.msra.mxu0 %v687
    %1157 = vmatpush.msra.mxu0 %v686
    %1158 = vmatpush.msra.mxu0 %v685
    %1159 = vmatpush.msra.mxu0 %v684
    %1160 = vmatpush.msra.mxu0 %v683
    %1161 = vmatmul.f32.gmra.mxu0 %v1143
    %v1162 = vpop.f32.mrf.mxu0
    %v1163 = vadd.f32 0.0, %v1162
    %1164 = vdwg.mxu0
    %v1166 = vrot.slane %v1163, 2
    %v1168 = vadd.f32 %v681, %v1166
    %v1169 = vxor.u32 %v1168, 2147483648
    %v1170 = vmul.f32 %v1169, 1.442695
    %v1171 = vpow.pop %v1170
    %v1172 = vadd.f32 %v1171, 1.0
    %v1173 = vrcp.pop %v1172
    %v1174 = vmul.f32 %v1172, %v1173
    %v1175 = vsub.f32 1.0, %v1174
    %v1176 = vmul.f32 %v1173, %v1175
    %v1177 = vadd.f32 %v1173, %v1176
    %vm1178 = vweird.f32 %v1172
    %vm1179 = vweird.f32 %v1173
    %vm1180 = vmor %vm1178, %vm1179
    %v1181 = vsel %vm1180, %v1173, %v1177
    %v1182 = vand.u32 2147483647, %v1172
    %vm1183 = vcmp.eq.f32.partialorder %v1182, 8.507059e+37
    %v1184 = vand.u32 %v1172, 2147483648
    %v1185 = vor.u32 1.1754944e-38, %v1184
    %v1186 = vsel %vm1183, %v1185, %v1181
    %v1187 = vmul.f32 1.0, %v1186
    %v1188 = vtanh.pop %v1168
    %v1190 = vrot.slane %v1188, 6
    %1192 = vrot.lane.b32.xlu0 %v1190, 64
    %v1193 = vpop.permute.xlu0 %1192
    %v1195 = vrot.slane %v1187, 6
    %1197 = vrot.lane.b32.xlu0 %v1195, 96
    %v1198 = vpop.permute.xlu0 %1197
    %1199 = vrot.lane.b32.xlu0 %v1195, 32
    %v1200 = vpop.permute.xlu0 %1199
    %v1201 = vmul.f32 %v1198, %v1141
    %v1203 = vrot.slane %v1193, 2
    %v1205 = vmul.f32 %v1187, %v1203
    %v1207 = vrot.slane %v1205, 6
    %v1209 = vadd.f32 %v1201, %v1207
    %v1210 = vtanh.pop %v1209
    %v1211 = vmul.f32 %v1200, %v1210
    %1212 = vst [vmem:[#allocation3 + $0xe] sm:$0x3] %v1211
    %v1213 = vld [vmem:[#allocation3] sm:$0xff]
    %v1214 = vld [vmem:[#allocation3 + $0x8] sm:$0xff]
    %v1215 = vld [vmem:[%s7] sm:$0xff]
    %v1216 = vld [vmem:[%s7 + $0x8] sm:$0xff]
    %v1217 = vld [vmem:[%s7 + $0x10] sm:$0xff]
    %v1218 = vld [vmem:[%s7 + $0x18] sm:$0xff]
    %v1219 = vld [vmem:[%s7 + $0x20] sm:$0xff]
    %v1220 = vld [vmem:[%s7 + $0x28] sm:$0xff]
    %v1221 = vld [vmem:[%s7 + $0x30] sm:$0xff]
    %v1222 = vld [vmem:[%s7 + $0x38] sm:$0xff]
    %v1223 = vld [vmem:[%s7 + $0x40] sm:$0xff]
    %v1224 = vld [vmem:[%s7 + $0x48] sm:$0xff]
    %v1225 = vld [vmem:[%s7 + $0x50] sm:$0xff]
    %v1226 = vld [vmem:[%s7 + $0x58] sm:$0xff]
    %v1227 = vld [vmem:[%s7 + $0x60] sm:$0xff]
    %v1228 = vld [vmem:[%s7 + $0x68] sm:$0xff]
    %v1229 = vld [vmem:[%s7 + $0x70] sm:$0xff]
    %v1230 = vld [vmem:[%s7 + $0x78] sm:$0xff]
    %v1231 = vld [vmem:[%s8] sm:$0x1]
    %v1233 = vperm.slane %v1231, 0
    %1235 = vmatpush.msra.mxu0 %v1230
    %1236 = vmatpush.msra.mxu0 %v1229
    %1237 = vmatpush.msra.mxu0 %v1228
    %1238 = vmatpush.msra.mxu0 %v1227
    %1239 = vmatpush.msra.mxu0 %v1226
    %1240 = vmatpush.msra.mxu0 %v1225
    %1241 = vmatpush.msra.mxu0 %v1224
    %1242 = vmatpush.msra.mxu0 %v1223
    %1243 = vmatpush.msra.mxu0 %v1222
    %1244 = vmatpush.msra.mxu0 %v1221
    %1245 = vmatpush.msra.mxu0 %v1220
    %1246 = vmatpush.msra.mxu0 %v1219
    %1247 = vmatpush.msra.mxu0 %v1218
    %1248 = vmatpush.msra.mxu0 %v1217
    %1249 = vmatpush.msra.mxu0 %v1216
    %1250 = vmatpush.msra.mxu0 %v1215
    %1251 = vmatmul.f32.gmra.mxu0 %v1213
    %v1252 = vpop.f32.mrf.mxu0
    %v1253 = vadd.f32 %v1233, %v1252
    %1254 = vmatmul.f32.gmra.mxu0 %v1214
    %v1255 = vpop.f32.mrf.mxu0
    %v1256 = vadd.f32 %v1233, %v1255
    %1257 = vdwg.mxu0
    %vm1258 = vcmask 211968
    %1259 = vst.msk [vmem:[%s9] sm:$0xff] %vm1258, %v1253
    %1260 = vst.msk [vmem:[%s9 + $0x8] sm:$0xff] %vm1258, %v1256
    // Predicated region
    $region46: #{recurrent_model_forward.1} parent=1 // pred_check
      _
    $region47: #{recurrent_model_forward.1} parent=1 // pred_check_branch
      %1262 = sbr.rel (0) target = $region49
    $region48: #{recurrent_model_forward.1} parent=1 // pred_region
      _
    $region49: #{recurrent_model_forward.1} parent=1 // pred_fallthru
      _
    // Predicated region
    $region50: #{recurrent_model_forward.1} parent=1 // pred_check
      _
    $region51: #{recurrent_model_forward.1} parent=1 // pred_check_branch
      %1264 = sbr.rel (0) target = $region53
    $region52: #{recurrent_model_forward.1} parent=1 // pred_region
      _
    $region53: #{recurrent_model_forward.1} parent=1 // pred_fallthru
      _
    %1265 = vsyncpa [#allocation5], 1
    %1266 = vsyncpa [#allocation7], 1

</llo_original>
